<compile_context>
chip_gen: v6e
topology: v6e:2x2x1
jax: 0.10.0
libtpu: 0.0.40
codegen_flags: <defaults>
</compile_context>

<pallas_src>
import math

import jax
import jax.numpy as jnp
from jax import lax
from jax.experimental import pallas as pl
from jax.experimental.pallas import tpu as pltpu

N_CODES = 32      # K in Encoding
D_HEAD = 128      # D in Encoding (head conv output channels)
C_FEAT = 2048     # backbone output channels
_BN_EPS = 1e-5

LAYER_CFG = ((64, 3, 1), (128, 4, 2), (256, 6, 2), (512, 3, 2))


# ----------------------------------------------------------------------------
# Pallas head kernel: one program handles a tile of Bt batch elements.
#   x_ref     : (Bt, N, C)  backbone features, bf16
#   w1t_ref   : (C, D)      transposed 1x1-conv weight, BN scale folded, bf16
#   shift_ref : (1, D)      folded conv-bias + BN shift, f32
#   cw_ref    : (K, D)      Encoding codewords, f32
#   sm_ref    : (1, K)      Encoding smoothing factors, f32
#   c2_ref    : (1, K)      precomputed ||codeword_k||^2, f32
#   out_ref   : (Bt, K, D)  L2-normalized residual encoding, f32
# ----------------------------------------------------------------------------
def _head_kernel(x_ref, w1t_ref, shift_ref, cw_ref, sm_ref, c2_ref, out_ref):
    Bt, N, Cin = x_ref.shape
    K, D = cw_ref.shape
    M = Bt * N

    X = x_ref[...].reshape(M, Cin)                        # (M, C) bf16
    # 1x1 conv == channel matmul on the MXU; bf16 operands, f32 accumulation.
    Y = jnp.dot(X, w1t_ref[...],
                preferred_element_type=jnp.float32)       # (M, D) f32
    Y = Y + shift_ref[...]                                # conv bias + BN(eval), folded
    Y = jnp.maximum(Y, 0.0)                               # ReLU

    C = cw_ref[...]                                       # (K, D)
    s = sm_ref[...]                                       # (1, K)
    c2 = c2_ref[...]                                      # (1, K) = ||C[k]||^2

    # scaled_l2: SL[m,k] = s[k] * ||Y[m] - C[k]||^2.
    # NOTE: the expansion (y2 - 2*cross + c2) can go slightly negative from
    # cancellation; harmless under the subsequent softmax.
    y2 = jnp.sum(Y * Y, axis=-1, keepdims=True)           # (M, 1)
    cross = lax.dot_general(Y, C, (((1,), (1,)), ((), ())),
                            preferred_element_type=jnp.float32)  # (M, K)
    sl = s * ((y2 + c2) - 2.0 * cross)                    # (M, K)

    # softmax over K (assignment weights); reciprocal on the EUP path.
    mx = jnp.max(sl, axis=-1, keepdims=True)
    e = jnp.exp(sl - mx)
    A = e * pl.reciprocal(jnp.sum(e, axis=-1, keepdims=True), approx=False)

    # aggregate per batch element: E[b,k,d] = sum_n A[b,n,k] * (Y[b,n,d] - C[k,d])
    Ab = A.reshape(Bt, N, K)
    Yb = Y.reshape(Bt, N, D)
    agg = jnp.einsum("bnk,bnd->bkd", Ab, Yb,
                     preferred_element_type=jnp.float32)  # (Bt, K, D)
    asum = jnp.sum(Ab, axis=1)                            # (Bt, K)  XLU reduce
    E = agg - asum[..., None] * C[None]                   # (Bt, K, D)

    # Normalize(): L2 normalization over the flattened (K*D) vector; rsqrt on EUP.
    ss = jnp.sum(jnp.sum(E * E, axis=-1, keepdims=True),
                 axis=-2, keepdims=True)                  # (Bt, 1, 1)
    out_ref[...] = E * lax.rsqrt(jnp.maximum(ss, 1e-24))


def _pick_batch_tile(B, N):
    """Largest divisor Bt of B with Bt*N <= 512 matmul rows; if that leaves a
    single grid step, fall back to >=2 steps when each still has >=256 rows
    (keeps v7x's two TensorCores busy without starving the MXU)."""
    best = 1
    for bt in range(1, B + 1):
        if B % bt == 0 and bt * N <= 512:
            best = bt
    if best == B and B > 1:
        for bt in range(best - 1, 0, -1):
            if B % bt == 0 and bt * N >= 256:
                best = bt
                break
    return best


def deepten2_head(feat, head_params):
    """feat: (B, C_FEAT, Hf, Wf) NCHW backbone output -> (B, K*D)."""
    B, C, Hf, Wf = feat.shape
    N = Hf * Wf
    # same ordering as x.view(B, D, -1).transpose(1, 2) in torch-encoding
    Xb = feat.reshape(B, C, N).transpose(0, 2, 1).astype(jnp.bfloat16)  # (B, N, C)

    a = 1.0 / math.sqrt(1.0 + _BN_EPS)                    # BN eval fold
    w1t = (head_params["w1"].reshape(D_HEAD, C).T * a).astype(jnp.bfloat16)  # (C, D)
    shift = (head_params["b1"] * a).reshape(1, D_HEAD).astype(jnp.float32)
    cw = head_params["codewords"].astype(jnp.float32)     # (K, D)
    sm = head_params["smooth"].reshape(1, N_CODES).astype(jnp.float32)
    c2 = jnp.sum(cw * cw, axis=-1).reshape(1, N_CODES)    # precomputed ||C_k||^2

    Bt = _pick_batch_tile(B, N)
    grid = (B // Bt,)

    out = pl.pallas_call(
        _head_kernel,
        out_shape=jax.ShapeDtypeStruct((B, N_CODES, D_HEAD), jnp.float32),
        grid_spec=pltpu.PrefetchScalarGridSpec(
            num_scalar_prefetch=0,
            grid=grid,
            in_specs=[
                pl.BlockSpec((Bt, N, C), lambda b: (b, 0, 0)),
                pl.BlockSpec((C, D_HEAD), lambda b: (0, 0)),
                pl.BlockSpec((1, D_HEAD), lambda b: (0, 0)),
                pl.BlockSpec((N_CODES, D_HEAD), lambda b: (0, 0)),
                pl.BlockSpec((1, N_CODES), lambda b: (0, 0)),
                pl.BlockSpec((1, N_CODES), lambda b: (0, 0)),
            ],
            out_specs=pl.BlockSpec((Bt, N_CODES, D_HEAD), lambda b: (b, 0, 0)),
        ),
        compiler_params=pltpu.CompilerParams(dimension_semantics=("parallel",)),
    )(Xb, w1t, shift, cw, sm, c2)
    return out.reshape(B, N_CODES * D_HEAD)


# ----------------------------------------------------------------------------
# ResNet50s-style backbone (plain JAX glue, deterministic synthetic weights)
# ----------------------------------------------------------------------------
def _conv(x, w, stride=1, padding=0):
    return lax.conv_general_dilated(
        x, w, window_strides=(stride, stride),
        padding=[(padding, padding), (padding, padding)],
        dimension_numbers=("NCHW", "OIHW", "NCHW"))


def _bn(x):
    # freshly-initialized BatchNorm2d in eval mode: gamma=1, beta=0, mean=0, var=1
    return x * (1.0 / math.sqrt(1.0 + _BN_EPS))


def _relu(x):
    return jnp.maximum(x, 0.0)


def _he_conv(key, out_c, in_c, kh, kw):
    fan_in = in_c * kh * kw
    return jax.random.normal(key, (out_c, in_c, kh, kw), jnp.float32) * math.sqrt(2.0 / fan_in)


def make_backbone_params(key):
    keys = iter(jax.random.split(key, 256))
    nk = lambda: next(keys)
    params = {"stem": [_he_conv(nk(), 64, 3, 3, 3),
                       _he_conv(nk(), 64, 64, 3, 3),
                       _he_conv(nk(), 128, 64, 3, 3)]}
    layers = []
    inplanes = 128
    for planes, blocks, stride in LAYER_CFG:
        blks = []
        for i in range(blocks):
            blk = {"w1": _he_conv(nk(), planes, inplanes, 1, 1),
                   "w2": _he_conv(nk(), planes, planes, 3, 3),
                   "w3": _he_conv(nk(), planes * 4, planes, 1, 1)}
            if i == 0:  # channel change (and possibly stride) -> downsample path
                blk["wd"] = _he_conv(nk(), planes * 4, inplanes, 1, 1)
            blks.append(blk)
            inplanes = planes * 4
        layers.append(blks)
    params["layers"] = layers
    return params


def backbone_forward(params, x):
    w0, w1, w2 = params["stem"]
    x = _relu(_bn(_conv(x, w0, stride=2, padding=1)))   # deep stem
    x = _relu(_bn(_conv(x, w1, stride=1, padding=1)))
    x = _relu(_bn(_conv(x, w2, stride=1, padding=1)))
    x = _relu(_bn(x))                                   # pretrained.bn1 + relu
    x = lax.reduce_window(x, -jnp.inf, lax.max,
                          (1, 1, 3, 3), (1, 1, 2, 2),
                          ((0, 0), (0, 0), (1, 1), (1, 1)))  # maxpool 3x3/2, pad 1
    for blks, (planes, blocks, stride) in zip(params["layers"], LAYER_CFG):
        for i, blk in enumerate(blks):
            s = stride if i == 0 else 1
            out = _relu(_bn(_conv(x, blk["w1"])))
            out = _relu(_bn(_conv(out, blk["w2"], stride=s, padding=1)))
            out = _bn(_conv(out, blk["w3"]))
            ident = _bn(_conv(x, blk["wd"], stride=s)) if "wd" in blk else x
            x = _relu(out + ident)
    return x                                            # (B, 2048, H/32, W/32)


def make_head_params(key):
    k1, k2, k3, k4 = jax.random.split(key, 4)
    bound = 1.0 / math.sqrt(C_FEAT)
    w1 = jax.random.uniform(k1, (D_HEAD, C_FEAT, 1, 1), jnp.float32, -bound, bound)
    b1 = jax.random.uniform(k2, (D_HEAD,), jnp.float32, -bound, bound)
    std1 = 1.0 / math.sqrt(N_CODES * D_HEAD)            # Encoding init
    codewords = jax.random.uniform(k3, (N_CODES, D_HEAD), jnp.float32, -std1, std1)
    smooth = jax.random.uniform(k4, (N_CODES,), jnp.float32, -1.0, 0.0)
    return {"w1": w1, "b1": b1, "codewords": codewords, "smooth": smooth}


@jax.jit
def deepten2_forward(params, x):
    feat = backbone_forward(params["backbone"], x)
    return deepten2_head(feat, params["head"])


if __name__ == "__main__":
    root = jax.random.PRNGKey(0)
    k_bb, k_head, k_x = jax.random.split(root, 3)
    params = {"backbone": make_backbone_params(k_bb),
              "head": make_head_params(k_head)}
    x = jax.random.normal(k_x, (2, 3, 128, 128), jnp.float32)   # NCHW image input

    out = deepten2_forward(params, x)
    out = jax.block_until_ready(out)

    assert out.shape == (2, N_CODES * D_HEAD), out.shape
    assert bool(jnp.all(jnp.isfinite(out)))
    norms = jnp.sqrt(jnp.sum(out * out, axis=1))
    assert bool(jnp.allclose(norms, 1.0, atol=1e-3)), norms
    print("KERNEL_OK")
</pallas_src>

<mosaic_0001>
module attributes {stable_mosaic.version = 11 : i64} {
  func.func @_head_kernel(%arg0: i32, %arg1: memref<2x16x2048xbf16, #tpu.memory_space<vmem>>, %arg2: memref<2048x128xbf16, #tpu.memory_space<vmem>>, %arg3: memref<1x128xf32, #tpu.memory_space<vmem>>, %arg4: memref<32x128xf32, #tpu.memory_space<vmem>>, %arg5: memref<1x32xf32, #tpu.memory_space<vmem>>, %arg6: memref<1x32xf32, #tpu.memory_space<vmem>>, %arg7: memref<2x32x128xf32, #tpu.memory_space<vmem>>) attributes {dimension_semantics = [#tpu.dimension_semantics<parallel>], iteration_bounds = array<i64: 1>, scalar_prefetch = 0 : i64, scratch_operands = 0 : i64, tpu.core_type = #tpu.core_type<tc>, window_params = [{transform_indices = @transform_0, window_bounds = array<i64: 2, 16, 2048>}, {pipeline_mode = #tpu.pipeline_mode<synchronous>, transform_indices = @transform_1, window_bounds = array<i64: 2048, 128>}, {pipeline_mode = #tpu.pipeline_mode<synchronous>, transform_indices = @transform_2, window_bounds = array<i64: 1, 128>}, {pipeline_mode = #tpu.pipeline_mode<synchronous>, transform_indices = @transform_3, window_bounds = array<i64: 32, 128>}, {pipeline_mode = #tpu.pipeline_mode<synchronous>, transform_indices = @transform_4, window_bounds = array<i64: 1, 32>}, {pipeline_mode = #tpu.pipeline_mode<synchronous>, transform_indices = @transform_5, window_bounds = array<i64: 1, 32>}, {transform_indices = @transform_6, window_bounds = array<i64: 2, 32, 128>}]} {
    %c0 = arith.constant 0 : index
    %c0_0 = arith.constant 0 : index
    %c0_1 = arith.constant 0 : index
    %0 = vector.load %arg1[%c0, %c0_0, %c0_1] : memref<2x16x2048xbf16, #tpu.memory_space<vmem>>, vector<2x16x2048xbf16>
    %1 = vector.shape_cast %0 : vector<2x16x2048xbf16> to vector<32x2048xbf16>
    %c0_2 = arith.constant 0 : index
    %c0_3 = arith.constant 0 : index
    %2 = vector.load %arg2[%c0_2, %c0_3] : memref<2048x128xbf16, #tpu.memory_space<vmem>>, vector<2048x128xbf16>
    %cst = arith.constant dense<0.000000e+00> : vector<32x128xf32>
    %3 = tpu.matmul %1, %2, %cst {dimension_numbers = #tpu.dot_dimension_numbers<[1], [0], [0], [1], [0, 0, 1, 1], [], []>} : vector<32x2048xbf16>, vector<2048x128xbf16>, vector<32x128xf32> -> vector<32x128xf32>
    %c0_4 = arith.constant 0 : index
    %c0_5 = arith.constant 0 : index
    %4 = vector.load %arg3[%c0_4, %c0_5] : memref<1x128xf32, #tpu.memory_space<vmem>>, vector<1x128xf32>
    %5 = vector.broadcast %4 : vector<1x128xf32> to vector<32x128xf32>
    %6 = arith.addf %3, %5 : vector<32x128xf32>
    %cst_6 = arith.constant 0.000000e+00 : f32
    %7 = vector.broadcast %cst_6 : f32 to vector<32x128xf32>
    %8 = arith.maximumf %6, %7 : vector<32x128xf32>
    %c0_7 = arith.constant 0 : index
    %c0_8 = arith.constant 0 : index
    %9 = vector.load %arg4[%c0_7, %c0_8] : memref<32x128xf32, #tpu.memory_space<vmem>>, vector<32x128xf32>
    %c0_9 = arith.constant 0 : index
    %c0_10 = arith.constant 0 : index
    %10 = vector.load %arg5[%c0_9, %c0_10] : memref<1x32xf32, #tpu.memory_space<vmem>>, vector<1x32xf32>
    %c0_11 = arith.constant 0 : index
    %c0_12 = arith.constant 0 : index
    %11 = vector.load %arg6[%c0_11, %c0_12] : memref<1x32xf32, #tpu.memory_space<vmem>>, vector<1x32xf32>
    %12 = arith.mulf %8, %8 : vector<32x128xf32>
    %cst_13 = arith.constant dense<0.000000e+00> : vector<32xf32>
    %13 = vector.multi_reduction <add>, %12, %cst_13 [1] : vector<32x128xf32> to vector<32xf32>
    %14 = vector.shape_cast %13 : vector<32xf32> to vector<32x1xf32>
    %cst_14 = arith.constant dense<0.000000e+00> : vector<32x32xf32>
    %15 = tpu.matmul %8, %9, %cst_14 {dimension_numbers = #tpu.dot_dimension_numbers<[1], [1], [0], [0], [0, 0, 1, 0], [], []>} : vector<32x128xf32>, vector<32x128xf32>, vector<32x32xf32> -> vector<32x32xf32>
    %16 = vector.broadcast %14 : vector<32x1xf32> to vector<32x32xf32>
    %17 = vector.broadcast %11 : vector<1x32xf32> to vector<32x32xf32>
    %18 = arith.addf %16, %17 : vector<32x32xf32>
    %cst_15 = arith.constant 2.000000e+00 : f32
    %19 = vector.broadcast %cst_15 : f32 to vector<32x32xf32>
    %20 = arith.mulf %19, %15 : vector<32x32xf32>
    %21 = arith.subf %18, %20 : vector<32x32xf32>
    %22 = vector.broadcast %10 : vector<1x32xf32> to vector<32x32xf32>
    %23 = arith.mulf %22, %21 : vector<32x32xf32>
    %cst_16 = arith.constant dense<0xFF800000> : vector<32xf32>
    %24 = vector.multi_reduction <maximumf>, %23, %cst_16 [1] : vector<32x32xf32> to vector<32xf32>
    %25 = vector.shape_cast %24 : vector<32xf32> to vector<32x1xf32>
    %26 = vector.broadcast %25 : vector<32x1xf32> to vector<32x32xf32>
    %27 = arith.subf %23, %26 : vector<32x32xf32>
    %28 = math.exp %27 : vector<32x32xf32>
    %cst_17 = arith.constant dense<0.000000e+00> : vector<32xf32>
    %29 = vector.multi_reduction <add>, %28, %cst_17 [1] : vector<32x32xf32> to vector<32xf32>
    %30 = vector.shape_cast %29 : vector<32xf32> to vector<32x1xf32>
    %31 = tpu.reciprocal %30 : vector<32x1xf32> -> vector<32x1xf32>
    %32 = vector.broadcast %31 : vector<32x1xf32> to vector<32x32xf32>
    %33 = arith.mulf %28, %32 : vector<32x32xf32>
    %34 = vector.shape_cast %33 : vector<32x32xf32> to vector<2x16x32xf32>
    %35 = vector.shape_cast %8 : vector<32x128xf32> to vector<2x16x128xf32>
    "tpu.trace_start"() <{level = 10 : i32, message = "bnk,bnd->bkd"}> : () -> ()
    %cst_18 = arith.constant dense<0.000000e+00> : vector<2x32x128xf32>
    %36 = tpu.matmul %34, %35, %cst_18 {dimension_numbers = #tpu.dot_dimension_numbers<[1], [1], [2], [2], [0, 0, 0, 2, 1, 2], [0], [0]>} : vector<2x16x32xf32>, vector<2x16x128xf32>, vector<2x32x128xf32> -> vector<2x32x128xf32>
    "tpu.trace_stop"() : () -> ()
    %cst_19 = arith.constant dense<0.000000e+00> : vector<2x32xf32>
    %37 = vector.multi_reduction <add>, %34, %cst_19 [1] : vector<2x16x32xf32> to vector<2x32xf32>
    %38 = vector.shape_cast %37 : vector<2x32xf32> to vector<2x32x1xf32>
    %39 = vector.shape_cast %9 : vector<32x128xf32> to vector<1x32x128xf32>
    %40 = vector.broadcast %38 : vector<2x32x1xf32> to vector<2x32x128xf32>
    %41 = vector.broadcast %39 : vector<1x32x128xf32> to vector<2x32x128xf32>
    %42 = arith.mulf %40, %41 : vector<2x32x128xf32>
    %43 = arith.subf %36, %42 : vector<2x32x128xf32>
    %44 = arith.mulf %43, %43 : vector<2x32x128xf32>
    %cst_20 = arith.constant dense<0.000000e+00> : vector<2x32xf32>
    %45 = vector.multi_reduction <add>, %44, %cst_20 [2] : vector<2x32x128xf32> to vector<2x32xf32>
    %46 = vector.shape_cast %45 : vector<2x32xf32> to vector<2x32x1xf32>
    %cst_21 = arith.constant dense<0.000000e+00> : vector<2x1xf32>
    %47 = vector.multi_reduction <add>, %46, %cst_21 [1] : vector<2x32x1xf32> to vector<2x1xf32>
    %48 = vector.shape_cast %47 : vector<2x1xf32> to vector<2x1x1xf32>
    %cst_22 = arith.constant 1.000000e-24 : f32
    %49 = vector.broadcast %cst_22 : f32 to vector<2x1x1xf32>
    %50 = arith.maximumf %48, %49 : vector<2x1x1xf32>
    %51 = math.rsqrt %50 : vector<2x1x1xf32>
    %52 = vector.broadcast %51 : vector<2x1x1xf32> to vector<2x32x128xf32>
    %53 = arith.mulf %43, %52 : vector<2x32x128xf32>
    %c0_23 = arith.constant 0 : index
    %c0_24 = arith.constant 0 : index
    %c0_25 = arith.constant 0 : index
    %54 = vector.load %arg7[%c0_23, %c0_24, %c0_25] : memref<2x32x128xf32, #tpu.memory_space<vmem>>, vector<2x32x128xf32>
    tpu.vector_store %arg7[%c0_23, %c0_24, %c0_25], %53 {strides = array<i32>} : memref<2x32x128xf32, #tpu.memory_space<vmem>>, vector<2x32x128xf32>,
    return
  }
  func.func @transform_0(%arg0: i32) -> (i32, i32, i32) {
    %c0_i32 = arith.constant 0 : i32
    %c0_i32_0 = arith.constant 0 : i32
    %c0_i32_1 = arith.constant 0 : i32
    return %arg0, %c0_i32, %c0_i32_0 : i32, i32, i32
  }
  func.func @transform_1(%arg0: i32) -> (i32, i32) {
    %c0_i32 = arith.constant 0 : i32
    %c0_i32_0 = arith.constant 0 : i32
    %c0_i32_1 = arith.constant 0 : i32
    return %c0_i32, %c0_i32_0 : i32, i32
  }
  func.func @transform_2(%arg0: i32) -> (i32, i32) {
    %c0_i32 = arith.constant 0 : i32
    %c0_i32_0 = arith.constant 0 : i32
    %c0_i32_1 = arith.constant 0 : i32
    return %c0_i32, %c0_i32_0 : i32, i32
  }
  func.func @transform_3(%arg0: i32) -> (i32, i32) {
    %c0_i32 = arith.constant 0 : i32
    %c0_i32_0 = arith.constant 0 : i32
    %c0_i32_1 = arith.constant 0 : i32
    return %c0_i32, %c0_i32_0 : i32, i32
  }
  func.func @transform_4(%arg0: i32) -> (i32, i32) {
    %c0_i32 = arith.constant 0 : i32
    %c0_i32_0 = arith.constant 0 : i32
    %c0_i32_1 = arith.constant 0 : i32
    return %c0_i32, %c0_i32_0 : i32, i32
  }
  func.func @transform_5(%arg0: i32) -> (i32, i32) {
    %c0_i32 = arith.constant 0 : i32
    %c0_i32_0 = arith.constant 0 : i32
    %c0_i32_1 = arith.constant 0 : i32
    return %c0_i32, %c0_i32_0 : i32, i32
  }
  func.func @transform_6(%arg0: i32) -> (i32, i32, i32) {
    %c0_i32 = arith.constant 0 : i32
    %c0_i32_0 = arith.constant 0 : i32
    %c0_i32_1 = arith.constant 0 : i32
    return %arg0, %c0_i32, %c0_i32_0 : i32, i32, i32
  }
}

</mosaic_0001>

<llo_original>
// kernel: deepten2_forward.1
$region0: #{deepten2_forward.1}
  #allocation0 [shape = 'u32[]', space=smem, size = 0x4, offset = 0x4, fixed_abs, tag = 'smem constant byte address 0x4 - core index']
  #allocation1 [shape = 'u32[144,128]{1,0:T(1,128)}', space=vmem, size = 0x12000, scoped, tag = 'internal scratch']
  %s0 = inlined_call_operand.vmem [shape: bf16[2,16,2048], index: 0, kind: input, shape index: {}]
  %s1 = inlined_call_operand.vmem [shape: bf16[2048,128], index: 1, kind: input, shape index: {}]
  %s2 = inlined_call_operand.vmem [shape: f32[1,128], index: 2, kind: input, shape index: {}]
  %s3 = inlined_call_operand.vmem [shape: f32[32,128], index: 3, kind: input, shape index: {}]
  %s4 = inlined_call_operand.vmem [shape: f32[1,32], index: 4, kind: input, shape index: {}]
  %s5 = inlined_call_operand.vmem [shape: f32[1,32], index: 5, kind: input, shape index: {}]
  %s6 = inlined_call_operand.vmem [shape: f32[2,32,128], index: 6, kind: output, shape index: {}]
  %s7 = sld [smem:[#allocation0]]
  $region34: #{deepten2_forward.1} parent=0
    _
  %s9 = ssub.s32 1, %s7
  %s10 = scalar_select 0, %s9, %s7
  // Predicated region
  $region2: #{deepten2_forward.1} parent=0 // pred_check
    _
  $region3: #{deepten2_forward.1} parent=0 // pred_check_branch
    %12 = sbr.rel (0) target = $region5
  $region4: #{deepten2_forward.1} parent=0 // pred_region
    _
  $region5: #{deepten2_forward.1} parent=0 // pred_fallthru
    _
  // Predicated region
  $region6: #{deepten2_forward.1} parent=0 // pred_check
    _
  $region7: #{deepten2_forward.1} parent=0 // pred_check_branch
    %14 = sbr.rel (0) target = $region9
  $region8: #{deepten2_forward.1} parent=0 // pred_region
    _
  $region9: #{deepten2_forward.1} parent=0 // pred_fallthru
    _
  // Predicated region
  $region10: #{deepten2_forward.1} parent=0 // pred_check
    _
  $region11: #{deepten2_forward.1} parent=0 // pred_check_branch
    %16 = sbr.rel (0) target = $region13
  $region12: #{deepten2_forward.1} parent=0 // pred_region
    _
  $region13: #{deepten2_forward.1} parent=0 // pred_fallthru
    _
  // Predicated region
  $region14: #{deepten2_forward.1} parent=0 // pred_check
    _
  $region15: #{deepten2_forward.1} parent=0 // pred_check_branch
    %18 = sbr.rel (0) target = $region17
  $region16: #{deepten2_forward.1} parent=0 // pred_region
    _
  $region17: #{deepten2_forward.1} parent=0 // pred_fallthru
    _
  // Predicated region
  $region18: #{deepten2_forward.1} parent=0 // pred_check
    _
  $region19: #{deepten2_forward.1} parent=0 // pred_check_branch
    %20 = sbr.rel (0) target = $region21
  $region20: #{deepten2_forward.1} parent=0 // pred_region
    _
  $region21: #{deepten2_forward.1} parent=0 // pred_fallthru
    _
  // Predicated region
  $region22: #{deepten2_forward.1} parent=0 // pred_check
    _
  $region23: #{deepten2_forward.1} parent=0 // pred_check_branch
    %22 = sbr.rel (0) target = $region25
  $region24: #{deepten2_forward.1} parent=0 // pred_region
    _
  $region25: #{deepten2_forward.1} parent=0 // pred_fallthru
    _
  %v24 = vld [vmem:[%s0] sm:$0xff]
  %v25 = vld [vmem:[%s0 + $0x8] sm:$0xff]
  %v26 = vld [vmem:[%s0 + $0x10] sm:$0xff]
  %v27 = vld [vmem:[%s0 + $0x18] sm:$0xff]
  %v28 = vld [vmem:[%s0 + $0x20] sm:$0xff]
  %v29 = vld [vmem:[%s0 + $0x28] sm:$0xff]
  %v30 = vld [vmem:[%s0 + $0x30] sm:$0xff]
  %v31 = vld [vmem:[%s0 + $0x38] sm:$0xff]
  %v32 = vld [vmem:[%s0 + $0x40] sm:$0xff]
  %v33 = vld [vmem:[%s0 + $0x48] sm:$0xff]
  %v34 = vld [vmem:[%s0 + $0x50] sm:$0xff]
  %v35 = vld [vmem:[%s0 + $0x58] sm:$0xff]
  %v36 = vld [vmem:[%s0 + $0x60] sm:$0xff]
  %v37 = vld [vmem:[%s0 + $0x68] sm:$0xff]
  %v38 = vld [vmem:[%s0 + $0x70] sm:$0xff]
  %v39 = vld [vmem:[%s0 + $0x78] sm:$0xff]
  %v40 = vld [vmem:[%s0 + $0x80] sm:$0xff]
  %v41 = vld [vmem:[%s0 + $0x88] sm:$0xff]
  %v42 = vld [vmem:[%s0 + $0x90] sm:$0xff]
  %v43 = vld [vmem:[%s0 + $0x98] sm:$0xff]
  %v44 = vld [vmem:[%s0 + $0xa0] sm:$0xff]
  %v45 = vld [vmem:[%s0 + $0xa8] sm:$0xff]
  %v46 = vld [vmem:[%s0 + $0xb0] sm:$0xff]
  %v47 = vld [vmem:[%s0 + $0xb8] sm:$0xff]
  %v48 = vld [vmem:[%s0 + $0xc0] sm:$0xff]
  %v49 = vld [vmem:[%s0 + $0xc8] sm:$0xff]
  %v50 = vld [vmem:[%s0 + $0xd0] sm:$0xff]
  %v51 = vld [vmem:[%s0 + $0xd8] sm:$0xff]
  %v52 = vld [vmem:[%s0 + $0xe0] sm:$0xff]
  %v53 = vld [vmem:[%s0 + $0xe8] sm:$0xff]
  %v54 = vld [vmem:[%s0 + $0xf0] sm:$0xff]
  %v55 = vld [vmem:[%s0 + $0xf8] sm:$0xff]
  %v56 = vld [vmem:[%s1] sm:$0xf]
  %v57 = vld [vmem:[%s1 + $0x4] sm:$0xf]
  %v58 = vld [vmem:[%s1 + $0x8] sm:$0xf]
  %v59 = vld [vmem:[%s1 + $0xc] sm:$0xf]
  %v60 = vld [vmem:[%s1 + $0x10] sm:$0xf]
  %v61 = vld [vmem:[%s1 + $0x14] sm:$0xf]
  %v62 = vld [vmem:[%s1 + $0x18] sm:$0xf]
  %v63 = vld [vmem:[%s1 + $0x1c] sm:$0xf]
  %v64 = vld [vmem:[%s1 + $0x20] sm:$0xf]
  %v65 = vld [vmem:[%s1 + $0x24] sm:$0xf]
  %v66 = vld [vmem:[%s1 + $0x28] sm:$0xf]
  %v67 = vld [vmem:[%s1 + $0x2c] sm:$0xf]
  %v68 = vld [vmem:[%s1 + $0x30] sm:$0xf]
  %v69 = vld [vmem:[%s1 + $0x34] sm:$0xf]
  %v70 = vld [vmem:[%s1 + $0x38] sm:$0xf]
  %v71 = vld [vmem:[%s1 + $0x3c] sm:$0xf]
  %v72 = vld [vmem:[%s1 + $0x40] sm:$0xf]
  %v73 = vld [vmem:[%s1 + $0x44] sm:$0xf]
  %v74 = vld [vmem:[%s1 + $0x48] sm:$0xf]
  %v75 = vld [vmem:[%s1 + $0x4c] sm:$0xf]
  %v76 = vld [vmem:[%s1 + $0x50] sm:$0xf]
  %v77 = vld [vmem:[%s1 + $0x54] sm:$0xf]
  %v78 = vld [vmem:[%s1 + $0x58] sm:$0xf]
  %v79 = vld [vmem:[%s1 + $0x5c] sm:$0xf]
  %v80 = vld [vmem:[%s1 + $0x60] sm:$0xf]
  %v81 = vld [vmem:[%s1 + $0x64] sm:$0xf]
  %v82 = vld [vmem:[%s1 + $0x68] sm:$0xf]
  %v83 = vld [vmem:[%s1 + $0x6c] sm:$0xf]
  %v84 = vld [vmem:[%s1 + $0x70] sm:$0xf]
  %v85 = vld [vmem:[%s1 + $0x74] sm:$0xf]
  %v86 = vld [vmem:[%s1 + $0x78] sm:$0xf]
  %v87 = vld [vmem:[%s1 + $0x7c] sm:$0xf]
  %v88 = vld [vmem:[%s1 + $0x80] sm:$0xf]
  %v89 = vld [vmem:[%s1 + $0x84] sm:$0xf]
  %v90 = vld [vmem:[%s1 + $0x88] sm:$0xf]
  %v91 = vld [vmem:[%s1 + $0x8c] sm:$0xf]
  %v92 = vld [vmem:[%s1 + $0x90] sm:$0xf]
  %v93 = vld [vmem:[%s1 + $0x94] sm:$0xf]
  %v94 = vld [vmem:[%s1 + $0x98] sm:$0xf]
  %v95 = vld [vmem:[%s1 + $0x9c] sm:$0xf]
  %v96 = vld [vmem:[%s1 + $0xa0] sm:$0xf]
  %v97 = vld [vmem:[%s1 + $0xa4] sm:$0xf]
  %v98 = vld [vmem:[%s1 + $0xa8] sm:$0xf]
  %v99 = vld [vmem:[%s1 + $0xac] sm:$0xf]
  %v100 = vld [vmem:[%s1 + $0xb0] sm:$0xf]
  %v101 = vld [vmem:[%s1 + $0xb4] sm:$0xf]
  %v102 = vld [vmem:[%s1 + $0xb8] sm:$0xf]
  %v103 = vld [vmem:[%s1 + $0xbc] sm:$0xf]
  %v104 = vld [vmem:[%s1 + $0xc0] sm:$0xf]
  %v105 = vld [vmem:[%s1 + $0xc4] sm:$0xf]
  %v106 = vld [vmem:[%s1 + $0xc8] sm:$0xf]
  %v107 = vld [vmem:[%s1 + $0xcc] sm:$0xf]
  %v108 = vld [vmem:[%s1 + $0xd0] sm:$0xf]
  %v109 = vld [vmem:[%s1 + $0xd4] sm:$0xf]
  %v110 = vld [vmem:[%s1 + $0xd8] sm:$0xf]
  %v111 = vld [vmem:[%s1 + $0xdc] sm:$0xf]
  %v112 = vld [vmem:[%s1 + $0xe0] sm:$0xf]
  %v113 = vld [vmem:[%s1 + $0xe4] sm:$0xf]
  %v114 = vld [vmem:[%s1 + $0xe8] sm:$0xf]
  %v115 = vld [vmem:[%s1 + $0xec] sm:$0xf]
  %v116 = vld [vmem:[%s1 + $0xf0] sm:$0xf]
  %v117 = vld [vmem:[%s1 + $0xf4] sm:$0xf]
  %v118 = vld [vmem:[%s1 + $0xf8] sm:$0xf]
  %v119 = vld [vmem:[%s1 + $0xfc] sm:$0xf]
  %v120 = vld [vmem:[%s1 + $0x100] sm:$0xf]
  %v121 = vld [vmem:[%s1 + $0x104] sm:$0xf]
  %v122 = vld [vmem:[%s1 + $0x108] sm:$0xf]
  %v123 = vld [vmem:[%s1 + $0x10c] sm:$0xf]
  %v124 = vld [vmem:[%s1 + $0x110] sm:$0xf]
  %v125 = vld [vmem:[%s1 + $0x114] sm:$0xf]
  %v126 = vld [vmem:[%s1 + $0x118] sm:$0xf]
  %v127 = vld [vmem:[%s1 + $0x11c] sm:$0xf]
  %v128 = vld [vmem:[%s1 + $0x120] sm:$0xf]
  %v129 = vld [vmem:[%s1 + $0x124] sm:$0xf]
  %v130 = vld [vmem:[%s1 + $0x128] sm:$0xf]
  %v131 = vld [vmem:[%s1 + $0x12c] sm:$0xf]
  %v132 = vld [vmem:[%s1 + $0x130] sm:$0xf]
  %v133 = vld [vmem:[%s1 + $0x134] sm:$0xf]
  %v134 = vld [vmem:[%s1 + $0x138] sm:$0xf]
  %v135 = vld [vmem:[%s1 + $0x13c] sm:$0xf]
  %v136 = vld [vmem:[%s1 + $0x140] sm:$0xf]
  %v137 = vld [vmem:[%s1 + $0x144] sm:$0xf]
  %v138 = vld [vmem:[%s1 + $0x148] sm:$0xf]
  %v139 = vld [vmem:[%s1 + $0x14c] sm:$0xf]
  %v140 = vld [vmem:[%s1 + $0x150] sm:$0xf]
  %v141 = vld [vmem:[%s1 + $0x154] sm:$0xf]
  %v142 = vld [vmem:[%s1 + $0x158] sm:$0xf]
  %v143 = vld [vmem:[%s1 + $0x15c] sm:$0xf]
  %v144 = vld [vmem:[%s1 + $0x160] sm:$0xf]
  %v145 = vld [vmem:[%s1 + $0x164] sm:$0xf]
  %v146 = vld [vmem:[%s1 + $0x168] sm:$0xf]
  %v147 = vld [vmem:[%s1 + $0x16c] sm:$0xf]
  %v148 = vld [vmem:[%s1 + $0x170] sm:$0xf]
  %v149 = vld [vmem:[%s1 + $0x174] sm:$0xf]
  %v150 = vld [vmem:[%s1 + $0x178] sm:$0xf]
  %v151 = vld [vmem:[%s1 + $0x17c] sm:$0xf]
  %v152 = vld [vmem:[%s1 + $0x180] sm:$0xf]
  %v153 = vld [vmem:[%s1 + $0x184] sm:$0xf]
  %v154 = vld [vmem:[%s1 + $0x188] sm:$0xf]
  %v155 = vld [vmem:[%s1 + $0x18c] sm:$0xf]
  %v156 = vld [vmem:[%s1 + $0x190] sm:$0xf]
  %v157 = vld [vmem:[%s1 + $0x194] sm:$0xf]
  %v158 = vld [vmem:[%s1 + $0x198] sm:$0xf]
  %v159 = vld [vmem:[%s1 + $0x19c] sm:$0xf]
  %v160 = vld [vmem:[%s1 + $0x1a0] sm:$0xf]
  %v161 = vld [vmem:[%s1 + $0x1a4] sm:$0xf]
  %v162 = vld [vmem:[%s1 + $0x1a8] sm:$0xf]
  %v163 = vld [vmem:[%s1 + $0x1ac] sm:$0xf]
  %v164 = vld [vmem:[%s1 + $0x1b0] sm:$0xf]
  %v165 = vld [vmem:[%s1 + $0x1b4] sm:$0xf]
  %v166 = vld [vmem:[%s1 + $0x1b8] sm:$0xf]
  %v167 = vld [vmem:[%s1 + $0x1bc] sm:$0xf]
  %v168 = vld [vmem:[%s1 + $0x1c0] sm:$0xf]
  %v169 = vld [vmem:[%s1 + $0x1c4] sm:$0xf]
  %v170 = vld [vmem:[%s1 + $0x1c8] sm:$0xf]
  %v171 = vld [vmem:[%s1 + $0x1cc] sm:$0xf]
  %v172 = vld [vmem:[%s1 + $0x1d0] sm:$0xf]
  %v173 = vld [vmem:[%s1 + $0x1d4] sm:$0xf]
  %v174 = vld [vmem:[%s1 + $0x1d8] sm:$0xf]
  %v175 = vld [vmem:[%s1 + $0x1dc] sm:$0xf]
  %v176 = vld [vmem:[%s1 + $0x1e0] sm:$0xf]
  %v177 = vld [vmem:[%s1 + $0x1e4] sm:$0xf]
  %v178 = vld [vmem:[%s1 + $0x1e8] sm:$0xf]
  %v179 = vld [vmem:[%s1 + $0x1ec] sm:$0xf]
  %v180 = vld [vmem:[%s1 + $0x1f0] sm:$0xf]
  %v181 = vld [vmem:[%s1 + $0x1f4] sm:$0xf]
  %v182 = vld [vmem:[%s1 + $0x1f8] sm:$0xf]
  %v183 = vld [vmem:[%s1 + $0x1fc] sm:$0xf]
  %v184 = vld [vmem:[%s1 + $0x200] sm:$0xf]
  %v185 = vld [vmem:[%s1 + $0x204] sm:$0xf]
  %v186 = vld [vmem:[%s1 + $0x208] sm:$0xf]
  %v187 = vld [vmem:[%s1 + $0x20c] sm:$0xf]
  %v188 = vld [vmem:[%s1 + $0x210] sm:$0xf]
  %v189 = vld [vmem:[%s1 + $0x214] sm:$0xf]
  %v190 = vld [vmem:[%s1 + $0x218] sm:$0xf]
  %v191 = vld [vmem:[%s1 + $0x21c] sm:$0xf]
  %v192 = vld [vmem:[%s1 + $0x220] sm:$0xf]
  %v193 = vld [vmem:[%s1 + $0x224] sm:$0xf]
  %v194 = vld [vmem:[%s1 + $0x228] sm:$0xf]
  %v195 = vld [vmem:[%s1 + $0x22c] sm:$0xf]
  %v196 = vld [vmem:[%s1 + $0x230] sm:$0xf]
  %v197 = vld [vmem:[%s1 + $0x234] sm:$0xf]
  %v198 = vld [vmem:[%s1 + $0x238] sm:$0xf]
  %v199 = vld [vmem:[%s1 + $0x23c] sm:$0xf]
  %v200 = vld [vmem:[%s1 + $0x240] sm:$0xf]
  %v201 = vld [vmem:[%s1 + $0x244] sm:$0xf]
  %v202 = vld [vmem:[%s1 + $0x248] sm:$0xf]
  %v203 = vld [vmem:[%s1 + $0x24c] sm:$0xf]
  %v204 = vld [vmem:[%s1 + $0x250] sm:$0xf]
  %v205 = vld [vmem:[%s1 + $0x254] sm:$0xf]
  %v206 = vld [vmem:[%s1 + $0x258] sm:$0xf]
  %v207 = vld [vmem:[%s1 + $0x25c] sm:$0xf]
  %v208 = vld [vmem:[%s1 + $0x260] sm:$0xf]
  %v209 = vld [vmem:[%s1 + $0x264] sm:$0xf]
  %v210 = vld [vmem:[%s1 + $0x268] sm:$0xf]
  %v211 = vld [vmem:[%s1 + $0x26c] sm:$0xf]
  %v212 = vld [vmem:[%s1 + $0x270] sm:$0xf]
  %v213 = vld [vmem:[%s1 + $0x274] sm:$0xf]
  %v214 = vld [vmem:[%s1 + $0x278] sm:$0xf]
  %v215 = vld [vmem:[%s1 + $0x27c] sm:$0xf]
  %v216 = vld [vmem:[%s1 + $0x280] sm:$0xf]
  %v217 = vld [vmem:[%s1 + $0x284] sm:$0xf]
  %v218 = vld [vmem:[%s1 + $0x288] sm:$0xf]
  %v219 = vld [vmem:[%s1 + $0x28c] sm:$0xf]
  %v220 = vld [vmem:[%s1 + $0x290] sm:$0xf]
  %v221 = vld [vmem:[%s1 + $0x294] sm:$0xf]
  %v222 = vld [vmem:[%s1 + $0x298] sm:$0xf]
  %v223 = vld [vmem:[%s1 + $0x29c] sm:$0xf]
  %v224 = vld [vmem:[%s1 + $0x2a0] sm:$0xf]
  %v225 = vld [vmem:[%s1 + $0x2a4] sm:$0xf]
  %v226 = vld [vmem:[%s1 + $0x2a8] sm:$0xf]
  %v227 = vld [vmem:[%s1 + $0x2ac] sm:$0xf]
  %v228 = vld [vmem:[%s1 + $0x2b0] sm:$0xf]
  %v229 = vld [vmem:[%s1 + $0x2b4] sm:$0xf]
  %v230 = vld [vmem:[%s1 + $0x2b8] sm:$0xf]
  %v231 = vld [vmem:[%s1 + $0x2bc] sm:$0xf]
  %v232 = vld [vmem:[%s1 + $0x2c0] sm:$0xf]
  %v233 = vld [vmem:[%s1 + $0x2c4] sm:$0xf]
  %v234 = vld [vmem:[%s1 + $0x2c8] sm:$0xf]
  %v235 = vld [vmem:[%s1 + $0x2cc] sm:$0xf]
  %v236 = vld [vmem:[%s1 + $0x2d0] sm:$0xf]
  %v237 = vld [vmem:[%s1 + $0x2d4] sm:$0xf]
  %v238 = vld [vmem:[%s1 + $0x2d8] sm:$0xf]
  %v239 = vld [vmem:[%s1 + $0x2dc] sm:$0xf]
  %v240 = vld [vmem:[%s1 + $0x2e0] sm:$0xf]
  %v241 = vld [vmem:[%s1 + $0x2e4] sm:$0xf]
  %v242 = vld [vmem:[%s1 + $0x2e8] sm:$0xf]
  %v243 = vld [vmem:[%s1 + $0x2ec] sm:$0xf]
  %v244 = vld [vmem:[%s1 + $0x2f0] sm:$0xf]
  %v245 = vld [vmem:[%s1 + $0x2f4] sm:$0xf]
  %v246 = vld [vmem:[%s1 + $0x2f8] sm:$0xf]
  %v247 = vld [vmem:[%s1 + $0x2fc] sm:$0xf]
  %v248 = vld [vmem:[%s1 + $0x300] sm:$0xf]
  %v249 = vld [vmem:[%s1 + $0x304] sm:$0xf]
  %v250 = vld [vmem:[%s1 + $0x308] sm:$0xf]
  %v251 = vld [vmem:[%s1 + $0x30c] sm:$0xf]
  %v252 = vld [vmem:[%s1 + $0x310] sm:$0xf]
  %v253 = vld [vmem:[%s1 + $0x314] sm:$0xf]
  %v254 = vld [vmem:[%s1 + $0x318] sm:$0xf]
  %v255 = vld [vmem:[%s1 + $0x31c] sm:$0xf]
  %v256 = vld [vmem:[%s1 + $0x320] sm:$0xf]
  %v257 = vld [vmem:[%s1 + $0x324] sm:$0xf]
  %v258 = vld [vmem:[%s1 + $0x328] sm:$0xf]
  %v259 = vld [vmem:[%s1 + $0x32c] sm:$0xf]
  %v260 = vld [vmem:[%s1 + $0x330] sm:$0xf]
  %v261 = vld [vmem:[%s1 + $0x334] sm:$0xf]
  %v262 = vld [vmem:[%s1 + $0x338] sm:$0xf]
  %v263 = vld [vmem:[%s1 + $0x33c] sm:$0xf]
  %v264 = vld [vmem:[%s1 + $0x340] sm:$0xf]
  %v265 = vld [vmem:[%s1 + $0x344] sm:$0xf]
  %v266 = vld [vmem:[%s1 + $0x348] sm:$0xf]
  %v267 = vld [vmem:[%s1 + $0x34c] sm:$0xf]
  %v268 = vld [vmem:[%s1 + $0x350] sm:$0xf]
  %v269 = vld [vmem:[%s1 + $0x354] sm:$0xf]
  %v270 = vld [vmem:[%s1 + $0x358] sm:$0xf]
  %v271 = vld [vmem:[%s1 + $0x35c] sm:$0xf]
  %v272 = vld [vmem:[%s1 + $0x360] sm:$0xf]
  %v273 = vld [vmem:[%s1 + $0x364] sm:$0xf]
  %v274 = vld [vmem:[%s1 + $0x368] sm:$0xf]
  %v275 = vld [vmem:[%s1 + $0x36c] sm:$0xf]
  %v276 = vld [vmem:[%s1 + $0x370] sm:$0xf]
  %v277 = vld [vmem:[%s1 + $0x374] sm:$0xf]
  %v278 = vld [vmem:[%s1 + $0x378] sm:$0xf]
  %v279 = vld [vmem:[%s1 + $0x37c] sm:$0xf]
  %v280 = vld [vmem:[%s1 + $0x380] sm:$0xf]
  %v281 = vld [vmem:[%s1 + $0x384] sm:$0xf]
  %v282 = vld [vmem:[%s1 + $0x388] sm:$0xf]
  %v283 = vld [vmem:[%s1 + $0x38c] sm:$0xf]
  %v284 = vld [vmem:[%s1 + $0x390] sm:$0xf]
  %v285 = vld [vmem:[%s1 + $0x394] sm:$0xf]
  %v286 = vld [vmem:[%s1 + $0x398] sm:$0xf]
  %v287 = vld [vmem:[%s1 + $0x39c] sm:$0xf]
  %v288 = vld [vmem:[%s1 + $0x3a0] sm:$0xf]
  %v289 = vld [vmem:[%s1 + $0x3a4] sm:$0xf]
  %v290 = vld [vmem:[%s1 + $0x3a8] sm:$0xf]
  %v291 = vld [vmem:[%s1 + $0x3ac] sm:$0xf]
  %v292 = vld [vmem:[%s1 + $0x3b0] sm:$0xf]
  %v293 = vld [vmem:[%s1 + $0x3b4] sm:$0xf]
  %v294 = vld [vmem:[%s1 + $0x3b8] sm:$0xf]
  %v295 = vld [vmem:[%s1 + $0x3bc] sm:$0xf]
  %v296 = vld [vmem:[%s1 + $0x3c0] sm:$0xf]
  %v297 = vld [vmem:[%s1 + $0x3c4] sm:$0xf]
  %v298 = vld [vmem:[%s1 + $0x3c8] sm:$0xf]
  %v299 = vld [vmem:[%s1 + $0x3cc] sm:$0xf]
  %v300 = vld [vmem:[%s1 + $0x3d0] sm:$0xf]
  %v301 = vld [vmem:[%s1 + $0x3d4] sm:$0xf]
  %v302 = vld [vmem:[%s1 + $0x3d8] sm:$0xf]
  %v303 = vld [vmem:[%s1 + $0x3dc] sm:$0xf]
  %v304 = vld [vmem:[%s1 + $0x3e0] sm:$0xf]
  %v305 = vld [vmem:[%s1 + $0x3e4] sm:$0xf]
  %v306 = vld [vmem:[%s1 + $0x3e8] sm:$0xf]
  %v307 = vld [vmem:[%s1 + $0x3ec] sm:$0xf]
  %v308 = vld [vmem:[%s1 + $0x3f0] sm:$0xf]
  %v309 = vld [vmem:[%s1 + $0x3f4] sm:$0xf]
  %v310 = vld [vmem:[%s1 + $0x3f8] sm:$0xf]
  %v311 = vld [vmem:[%s1 + $0x3fc] sm:$0xf]
  %v312 = vld [vmem:[%s2] sm:$0x1]
  %v314 = vlaneseq
  %v315 = vshrl.u32 %v314, 7
  %v316 = vsub.s32 0, %v315
  %v317 = vrot.slane %v312, %v316
  %v351 = vunpack.c.l.b16 %v24
  %v352 = vunpack.c.h.b16 %v24
  %v353 = vunpack.c.l.b16 %v25
  %v354 = vunpack.c.h.b16 %v25
  %v355 = vunpack.c.l.b16 %v26
  %v356 = vunpack.c.h.b16 %v26
  %v357 = vunpack.c.l.b16 %v27
  %v358 = vunpack.c.h.b16 %v27
  %v359 = vunpack.c.l.b16 %v28
  %v360 = vunpack.c.h.b16 %v28
  %v361 = vunpack.c.l.b16 %v29
  %v362 = vunpack.c.h.b16 %v29
  %v363 = vunpack.c.l.b16 %v30
  %v364 = vunpack.c.h.b16 %v30
  %v365 = vunpack.c.l.b16 %v31
  %v366 = vunpack.c.h.b16 %v31
  %v367 = vunpack.c.l.b16 %v32
  %v368 = vunpack.c.h.b16 %v32
  %v369 = vunpack.c.l.b16 %v33
  %v370 = vunpack.c.h.b16 %v33
  %v371 = vunpack.c.l.b16 %v34
  %v372 = vunpack.c.h.b16 %v34
  %v373 = vunpack.c.l.b16 %v35
  %v374 = vunpack.c.h.b16 %v35
  %v375 = vunpack.c.l.b16 %v36
  %v376 = vunpack.c.h.b16 %v36
  %v377 = vunpack.c.l.b16 %v37
  %v378 = vunpack.c.h.b16 %v37
  %v379 = vunpack.c.l.b16 %v38
  %v380 = vunpack.c.h.b16 %v38
  %v381 = vunpack.c.l.b16 %v39
  %v382 = vunpack.c.h.b16 %v39
  %v383 = vunpack.c.l.b16 %v40
  %v384 = vunpack.c.h.b16 %v40
  %v385 = vunpack.c.l.b16 %v41
  %v386 = vunpack.c.h.b16 %v41
  %v387 = vunpack.c.l.b16 %v42
  %v388 = vunpack.c.h.b16 %v42
  %v389 = vunpack.c.l.b16 %v43
  %v390 = vunpack.c.h.b16 %v43
  %v391 = vunpack.c.l.b16 %v44
  %v392 = vunpack.c.h.b16 %v44
  %v393 = vunpack.c.l.b16 %v45
  %v394 = vunpack.c.h.b16 %v45
  %v395 = vunpack.c.l.b16 %v46
  %v396 = vunpack.c.h.b16 %v46
  %v397 = vunpack.c.l.b16 %v47
  %v398 = vunpack.c.h.b16 %v47
  %v399 = vunpack.c.l.b16 %v48
  %v400 = vunpack.c.h.b16 %v48
  %v401 = vunpack.c.l.b16 %v49
  %v402 = vunpack.c.h.b16 %v49
  %v403 = vunpack.c.l.b16 %v50
  %v404 = vunpack.c.h.b16 %v50
  %v405 = vunpack.c.l.b16 %v51
  %v406 = vunpack.c.h.b16 %v51
  %v407 = vunpack.c.l.b16 %v52
  %v408 = vunpack.c.h.b16 %v52
  %v409 = vunpack.c.l.b16 %v53
  %v410 = vunpack.c.h.b16 %v53
  %v411 = vunpack.c.l.b16 %v54
  %v412 = vunpack.c.h.b16 %v54
  %v413 = vunpack.c.l.b16 %v55
  %v414 = vunpack.c.h.b16 %v55
  %v415 = vpack.c.b16 %v367, %v351
  %v416 = vpack.c.b16 %v368, %v352
  %v417 = vpack.c.b16 %v369, %v353
  %v418 = vpack.c.b16 %v370, %v354
  %v419 = vpack.c.b16 %v371, %v355
  %v420 = vpack.c.b16 %v372, %v356
  %v421 = vpack.c.b16 %v373, %v357
  %v422 = vpack.c.b16 %v374, %v358
  %v423 = vpack.c.b16 %v375, %v359
  %v424 = vpack.c.b16 %v376, %v360
  %v425 = vpack.c.b16 %v377, %v361
  %v426 = vpack.c.b16 %v378, %v362
  %v427 = vpack.c.b16 %v379, %v363
  %v428 = vpack.c.b16 %v380, %v364
  %v429 = vpack.c.b16 %v381, %v365
  %v430 = vpack.c.b16 %v382, %v366
  %v431 = vpack.c.b16 %v399, %v383
  %v432 = vpack.c.b16 %v400, %v384
  %v433 = vpack.c.b16 %v401, %v385
  %v434 = vpack.c.b16 %v402, %v386
  %v435 = vpack.c.b16 %v403, %v387
  %v436 = vpack.c.b16 %v404, %v388
  %v437 = vpack.c.b16 %v405, %v389
  %v438 = vpack.c.b16 %v406, %v390
  %v439 = vpack.c.b16 %v407, %v391
  %v440 = vpack.c.b16 %v408, %v392
  %v441 = vpack.c.b16 %v409, %v393
  %v442 = vpack.c.b16 %v410, %v394
  %v443 = vpack.c.b16 %v411, %v395
  %v444 = vpack.c.b16 %v412, %v396
  %v445 = vpack.c.b16 %v413, %v397
  %v446 = vpack.c.b16 %v414, %v398
  %v735 = vunpack.c.l.b16 %v56
  %v736 = vunpack.c.l.b16 %v57
  %v737 = vunpack.c.l.b16 %v58
  %v738 = vunpack.c.l.b16 %v59
  %v739 = vunpack.c.l.b16 %v60
  %v740 = vunpack.c.l.b16 %v61
  %v741 = vunpack.c.l.b16 %v62
  %v742 = vunpack.c.l.b16 %v63
  %v743 = vunpack.c.l.b16 %v64
  %v744 = vunpack.c.l.b16 %v65
  %v745 = vunpack.c.l.b16 %v66
  %v746 = vunpack.c.l.b16 %v67
  %v747 = vunpack.c.l.b16 %v68
  %v748 = vunpack.c.l.b16 %v69
  %v749 = vunpack.c.l.b16 %v70
  %v750 = vunpack.c.l.b16 %v71
  %v751 = vunpack.c.l.b16 %v72
  %v752 = vunpack.c.l.b16 %v73
  %v753 = vunpack.c.l.b16 %v74
  %v754 = vunpack.c.l.b16 %v75
  %v755 = vunpack.c.l.b16 %v76
  %v756 = vunpack.c.l.b16 %v77
  %v757 = vunpack.c.l.b16 %v78
  %v758 = vunpack.c.l.b16 %v79
  %v759 = vunpack.c.l.b16 %v80
  %v760 = vunpack.c.l.b16 %v81
  %v761 = vunpack.c.l.b16 %v82
  %v762 = vunpack.c.l.b16 %v83
  %v763 = vunpack.c.l.b16 %v84
  %v764 = vunpack.c.l.b16 %v85
  %v765 = vunpack.c.l.b16 %v86
  %v766 = vunpack.c.l.b16 %v87
  %v767 = vunpack.c.l.b16 %v88
  %v768 = vunpack.c.l.b16 %v89
  %v769 = vunpack.c.l.b16 %v90
  %v770 = vunpack.c.l.b16 %v91
  %v771 = vunpack.c.l.b16 %v92
  %v772 = vunpack.c.l.b16 %v93
  %v773 = vunpack.c.l.b16 %v94
  %v774 = vunpack.c.l.b16 %v95
  %v775 = vunpack.c.l.b16 %v96
  %v776 = vunpack.c.l.b16 %v97
  %v777 = vunpack.c.l.b16 %v98
  %v778 = vunpack.c.l.b16 %v99
  %v779 = vunpack.c.l.b16 %v100
  %v780 = vunpack.c.l.b16 %v101
  %v781 = vunpack.c.l.b16 %v102
  %v782 = vunpack.c.l.b16 %v103
  %v783 = vunpack.c.l.b16 %v104
  %v784 = vunpack.c.l.b16 %v105
  %v785 = vunpack.c.l.b16 %v106
  %v786 = vunpack.c.l.b16 %v107
  %v787 = vunpack.c.l.b16 %v108
  %v788 = vunpack.c.l.b16 %v109
  %v789 = vunpack.c.l.b16 %v110
  %v790 = vunpack.c.l.b16 %v111
  %v791 = vunpack.c.l.b16 %v112
  %v792 = vunpack.c.l.b16 %v113
  %v793 = vunpack.c.l.b16 %v114
  %v794 = vunpack.c.l.b16 %v115
  %v795 = vunpack.c.l.b16 %v116
  %v796 = vunpack.c.l.b16 %v117
  %v797 = vunpack.c.l.b16 %v118
  %v798 = vunpack.c.l.b16 %v119
  %v799 = vunpack.c.l.b16 %v120
  %v800 = vunpack.c.l.b16 %v121
  %v801 = vunpack.c.l.b16 %v122
  %v802 = vunpack.c.l.b16 %v123
  %v803 = vunpack.c.l.b16 %v124
  %v804 = vunpack.c.l.b16 %v125
  %v805 = vunpack.c.l.b16 %v126
  %v806 = vunpack.c.l.b16 %v127
  %v807 = vunpack.c.l.b16 %v128
  %v808 = vunpack.c.l.b16 %v129
  %v809 = vunpack.c.l.b16 %v130
  %v810 = vunpack.c.l.b16 %v131
  %v811 = vunpack.c.l.b16 %v132
  %v812 = vunpack.c.l.b16 %v133
  %v813 = vunpack.c.l.b16 %v134
  %v814 = vunpack.c.l.b16 %v135
  %v815 = vunpack.c.l.b16 %v136
  %v816 = vunpack.c.l.b16 %v137
  %v817 = vunpack.c.l.b16 %v138
  %v818 = vunpack.c.l.b16 %v139
  %v819 = vunpack.c.l.b16 %v140
  %v820 = vunpack.c.l.b16 %v141
  %v821 = vunpack.c.l.b16 %v142
  %v822 = vunpack.c.l.b16 %v143
  %v823 = vunpack.c.l.b16 %v144
  %v824 = vunpack.c.l.b16 %v145
  %v825 = vunpack.c.l.b16 %v146
  %v826 = vunpack.c.l.b16 %v147
  %v827 = vunpack.c.l.b16 %v148
  %v828 = vunpack.c.l.b16 %v149
  %v829 = vunpack.c.l.b16 %v150
  %v830 = vunpack.c.l.b16 %v151
  %v831 = vunpack.c.l.b16 %v152
  %v832 = vunpack.c.l.b16 %v153
  %v833 = vunpack.c.l.b16 %v154
  %v834 = vunpack.c.l.b16 %v155
  %v835 = vunpack.c.l.b16 %v156
  %v836 = vunpack.c.l.b16 %v157
  %v837 = vunpack.c.l.b16 %v158
  %v838 = vunpack.c.l.b16 %v159
  %v839 = vunpack.c.l.b16 %v160
  %v840 = vunpack.c.l.b16 %v161
  %v841 = vunpack.c.l.b16 %v162
  %v842 = vunpack.c.l.b16 %v163
  %v843 = vunpack.c.l.b16 %v164
  %v844 = vunpack.c.l.b16 %v165
  %v845 = vunpack.c.l.b16 %v166
  %v846 = vunpack.c.l.b16 %v167
  %v847 = vunpack.c.l.b16 %v168
  %v848 = vunpack.c.l.b16 %v169
  %v849 = vunpack.c.l.b16 %v170
  %v850 = vunpack.c.l.b16 %v171
  %v851 = vunpack.c.l.b16 %v172
  %v852 = vunpack.c.l.b16 %v173
  %v853 = vunpack.c.l.b16 %v174
  %v854 = vunpack.c.l.b16 %v175
  %v855 = vunpack.c.l.b16 %v176
  %v856 = vunpack.c.l.b16 %v177
  %v857 = vunpack.c.l.b16 %v178
  %v858 = vunpack.c.l.b16 %v179
  %v859 = vunpack.c.l.b16 %v180
  %v860 = vunpack.c.l.b16 %v181
  %v861 = vunpack.c.l.b16 %v182
  %v862 = vunpack.c.l.b16 %v183
  %v863 = vunpack.c.l.b16 %v184
  %v864 = vunpack.c.l.b16 %v185
  %v865 = vunpack.c.l.b16 %v186
  %v866 = vunpack.c.l.b16 %v187
  %v867 = vunpack.c.l.b16 %v188
  %v868 = vunpack.c.l.b16 %v189
  %v869 = vunpack.c.l.b16 %v190
  %v870 = vunpack.c.l.b16 %v191
  %v871 = vunpack.c.l.b16 %v192
  %v872 = vunpack.c.l.b16 %v193
  %v873 = vunpack.c.l.b16 %v194
  %v874 = vunpack.c.l.b16 %v195
  %v875 = vunpack.c.l.b16 %v196
  %v876 = vunpack.c.l.b16 %v197
  %v877 = vunpack.c.l.b16 %v198
  %v878 = vunpack.c.l.b16 %v199
  %v879 = vunpack.c.l.b16 %v200
  %v880 = vunpack.c.l.b16 %v201
  %v881 = vunpack.c.l.b16 %v202
  %v882 = vunpack.c.l.b16 %v203
  %v883 = vunpack.c.l.b16 %v204
  %v884 = vunpack.c.l.b16 %v205
  %v885 = vunpack.c.l.b16 %v206
  %v886 = vunpack.c.l.b16 %v207
  %v887 = vunpack.c.l.b16 %v208
  %v888 = vunpack.c.l.b16 %v209
  %v889 = vunpack.c.l.b16 %v210
  %v890 = vunpack.c.l.b16 %v211
  %v891 = vunpack.c.l.b16 %v212
  %v892 = vunpack.c.l.b16 %v213
  %v893 = vunpack.c.l.b16 %v214
  %v894 = vunpack.c.l.b16 %v215
  %v895 = vunpack.c.l.b16 %v216
  %v896 = vunpack.c.l.b16 %v217
  %v897 = vunpack.c.l.b16 %v218
  %v898 = vunpack.c.l.b16 %v219
  %v899 = vunpack.c.l.b16 %v220
  %v900 = vunpack.c.l.b16 %v221
  %v901 = vunpack.c.l.b16 %v222
  %v902 = vunpack.c.l.b16 %v223
  %v903 = vunpack.c.l.b16 %v224
  %v904 = vunpack.c.l.b16 %v225
  %v905 = vunpack.c.l.b16 %v226
  %v906 = vunpack.c.l.b16 %v227
  %v907 = vunpack.c.l.b16 %v228
  %v908 = vunpack.c.l.b16 %v229
  %v909 = vunpack.c.l.b16 %v230
  %v910 = vunpack.c.l.b16 %v231
  %v911 = vunpack.c.l.b16 %v232
  %v912 = vunpack.c.l.b16 %v233
  %v913 = vunpack.c.l.b16 %v234
  %v914 = vunpack.c.l.b16 %v235
  %v915 = vunpack.c.l.b16 %v236
  %v916 = vunpack.c.l.b16 %v237
  %v917 = vunpack.c.l.b16 %v238
  %v918 = vunpack.c.l.b16 %v239
  %v919 = vunpack.c.l.b16 %v240
  %v920 = vunpack.c.l.b16 %v241
  %v921 = vunpack.c.l.b16 %v242
  %v922 = vunpack.c.l.b16 %v243
  %v923 = vunpack.c.l.b16 %v244
  %v924 = vunpack.c.l.b16 %v245
  %v925 = vunpack.c.l.b16 %v246
  %v926 = vunpack.c.l.b16 %v247
  %v927 = vunpack.c.l.b16 %v248
  %v928 = vunpack.c.l.b16 %v249
  %v929 = vunpack.c.l.b16 %v250
  %v930 = vunpack.c.l.b16 %v251
  %v931 = vunpack.c.l.b16 %v252
  %v932 = vunpack.c.l.b16 %v253
  %v933 = vunpack.c.l.b16 %v254
  %v934 = vunpack.c.l.b16 %v255
  %v935 = vunpack.c.l.b16 %v256
  %v936 = vunpack.c.l.b16 %v257
  %v937 = vunpack.c.l.b16 %v258
  %v938 = vunpack.c.l.b16 %v259
  %v939 = vunpack.c.l.b16 %v260
  %v940 = vunpack.c.l.b16 %v261
  %v941 = vunpack.c.l.b16 %v262
  %v942 = vunpack.c.l.b16 %v263
  %v943 = vunpack.c.l.b16 %v264
  %v944 = vunpack.c.l.b16 %v265
  %v945 = vunpack.c.l.b16 %v266
  %v946 = vunpack.c.l.b16 %v267
  %v947 = vunpack.c.l.b16 %v268
  %v948 = vunpack.c.l.b16 %v269
  %v949 = vunpack.c.l.b16 %v270
  %v950 = vunpack.c.l.b16 %v271
  %v951 = vunpack.c.l.b16 %v272
  %v952 = vunpack.c.l.b16 %v273
  %v953 = vunpack.c.l.b16 %v274
  %v954 = vunpack.c.l.b16 %v275
  %v955 = vunpack.c.l.b16 %v276
  %v956 = vunpack.c.l.b16 %v277
  %v957 = vunpack.c.l.b16 %v278
  %v958 = vunpack.c.l.b16 %v279
  %v959 = vunpack.c.l.b16 %v280
  %v960 = vunpack.c.l.b16 %v281
  %v961 = vunpack.c.l.b16 %v282
  %v962 = vunpack.c.l.b16 %v283
  %v963 = vunpack.c.l.b16 %v284
  %v964 = vunpack.c.l.b16 %v285
  %v965 = vunpack.c.l.b16 %v286
  %v966 = vunpack.c.l.b16 %v287
  %v967 = vunpack.c.l.b16 %v288
  %v968 = vunpack.c.l.b16 %v289
  %v969 = vunpack.c.l.b16 %v290
  %v970 = vunpack.c.l.b16 %v291
  %v971 = vunpack.c.l.b16 %v292
  %v972 = vunpack.c.l.b16 %v293
  %v973 = vunpack.c.l.b16 %v294
  %v974 = vunpack.c.l.b16 %v295
  %v975 = vunpack.c.l.b16 %v296
  %v976 = vunpack.c.l.b16 %v297
  %v977 = vunpack.c.l.b16 %v298
  %v978 = vunpack.c.l.b16 %v299
  %v979 = vunpack.c.l.b16 %v300
  %v980 = vunpack.c.l.b16 %v301
  %v981 = vunpack.c.l.b16 %v302
  %v982 = vunpack.c.l.b16 %v303
  %v983 = vunpack.c.l.b16 %v304
  %v984 = vunpack.c.l.b16 %v305
  %v985 = vunpack.c.l.b16 %v306
  %v986 = vunpack.c.l.b16 %v307
  %v987 = vunpack.c.l.b16 %v308
  %v988 = vunpack.c.l.b16 %v309
  %v989 = vunpack.c.l.b16 %v310
  %v990 = vunpack.c.l.b16 %v311
  %v991 = vpack.c.b16 %v736, %v735
  %v992 = vpack.c.b16 %v738, %v737
  %v993 = vpack.c.b16 %v740, %v739
  %v994 = vpack.c.b16 %v742, %v741
  %v995 = vpack.c.b16 %v744, %v743
  %v996 = vpack.c.b16 %v746, %v745
  %v997 = vpack.c.b16 %v748, %v747
  %v998 = vpack.c.b16 %v750, %v749
  %v999 = vpack.c.b16 %v752, %v751
  %v1000 = vpack.c.b16 %v754, %v753
  %v1001 = vpack.c.b16 %v756, %v755
  %v1002 = vpack.c.b16 %v758, %v757
  %v1003 = vpack.c.b16 %v760, %v759
  %v1004 = vpack.c.b16 %v762, %v761
  %v1005 = vpack.c.b16 %v764, %v763
  %v1006 = vpack.c.b16 %v766, %v765
  %v1007 = vpack.c.b16 %v768, %v767
  %v1008 = vpack.c.b16 %v770, %v769
  %v1009 = vpack.c.b16 %v772, %v771
  %v1010 = vpack.c.b16 %v774, %v773
  %v1011 = vpack.c.b16 %v776, %v775
  %v1012 = vpack.c.b16 %v778, %v777
  %v1013 = vpack.c.b16 %v780, %v779
  %v1014 = vpack.c.b16 %v782, %v781
  %v1015 = vpack.c.b16 %v784, %v783
  %v1016 = vpack.c.b16 %v786, %v785
  %v1017 = vpack.c.b16 %v788, %v787
  %v1018 = vpack.c.b16 %v790, %v789
  %v1019 = vpack.c.b16 %v792, %v791
  %v1020 = vpack.c.b16 %v794, %v793
  %v1021 = vpack.c.b16 %v796, %v795
  %v1022 = vpack.c.b16 %v798, %v797
  %v1023 = vpack.c.b16 %v800, %v799
  %v1024 = vpack.c.b16 %v802, %v801
  %v1025 = vpack.c.b16 %v804, %v803
  %v1026 = vpack.c.b16 %v806, %v805
  %v1027 = vpack.c.b16 %v808, %v807
  %v1028 = vpack.c.b16 %v810, %v809
  %v1029 = vpack.c.b16 %v812, %v811
  %v1030 = vpack.c.b16 %v814, %v813
  %v1031 = vpack.c.b16 %v816, %v815
  %v1032 = vpack.c.b16 %v818, %v817
  %v1033 = vpack.c.b16 %v820, %v819
  %v1034 = vpack.c.b16 %v822, %v821
  %v1035 = vpack.c.b16 %v824, %v823
  %v1036 = vpack.c.b16 %v826, %v825
  %v1037 = vpack.c.b16 %v828, %v827
  %v1038 = vpack.c.b16 %v830, %v829
  %v1039 = vpack.c.b16 %v832, %v831
  %v1040 = vpack.c.b16 %v834, %v833
  %v1041 = vpack.c.b16 %v836, %v835
  %v1042 = vpack.c.b16 %v838, %v837
  %v1043 = vpack.c.b16 %v840, %v839
  %v1044 = vpack.c.b16 %v842, %v841
  %v1045 = vpack.c.b16 %v844, %v843
  %v1046 = vpack.c.b16 %v846, %v845
  %v1047 = vpack.c.b16 %v848, %v847
  %v1048 = vpack.c.b16 %v850, %v849
  %v1049 = vpack.c.b16 %v852, %v851
  %v1050 = vpack.c.b16 %v854, %v853
  %v1051 = vpack.c.b16 %v856, %v855
  %v1052 = vpack.c.b16 %v858, %v857
  %v1053 = vpack.c.b16 %v860, %v859
  %v1054 = vpack.c.b16 %v862, %v861
  %v1055 = vpack.c.b16 %v864, %v863
  %v1056 = vpack.c.b16 %v866, %v865
  %v1057 = vpack.c.b16 %v868, %v867
  %v1058 = vpack.c.b16 %v870, %v869
  %v1059 = vpack.c.b16 %v872, %v871
  %v1060 = vpack.c.b16 %v874, %v873
  %v1061 = vpack.c.b16 %v876, %v875
  %v1062 = vpack.c.b16 %v878, %v877
  %v1063 = vpack.c.b16 %v880, %v879
  %v1064 = vpack.c.b16 %v882, %v881
  %v1065 = vpack.c.b16 %v884, %v883
  %v1066 = vpack.c.b16 %v886, %v885
  %v1067 = vpack.c.b16 %v888, %v887
  %v1068 = vpack.c.b16 %v890, %v889
  %v1069 = vpack.c.b16 %v892, %v891
  %v1070 = vpack.c.b16 %v894, %v893
  %v1071 = vpack.c.b16 %v896, %v895
  %v1072 = vpack.c.b16 %v898, %v897
  %v1073 = vpack.c.b16 %v900, %v899
  %v1074 = vpack.c.b16 %v902, %v901
  %v1075 = vpack.c.b16 %v904, %v903
  %v1076 = vpack.c.b16 %v906, %v905
  %v1077 = vpack.c.b16 %v908, %v907
  %v1078 = vpack.c.b16 %v910, %v909
  %v1079 = vpack.c.b16 %v912, %v911
  %v1080 = vpack.c.b16 %v914, %v913
  %v1081 = vpack.c.b16 %v916, %v915
  %v1082 = vpack.c.b16 %v918, %v917
  %v1083 = vpack.c.b16 %v920, %v919
  %v1084 = vpack.c.b16 %v922, %v921
  %v1085 = vpack.c.b16 %v924, %v923
  %v1086 = vpack.c.b16 %v926, %v925
  %v1087 = vpack.c.b16 %v928, %v927
  %v1088 = vpack.c.b16 %v930, %v929
  %v1089 = vpack.c.b16 %v932, %v931
  %v1090 = vpack.c.b16 %v934, %v933
  %v1091 = vpack.c.b16 %v936, %v935
  %v1092 = vpack.c.b16 %v938, %v937
  %v1093 = vpack.c.b16 %v940, %v939
  %v1094 = vpack.c.b16 %v942, %v941
  %v1095 = vpack.c.b16 %v944, %v943
  %v1096 = vpack.c.b16 %v946, %v945
  %v1097 = vpack.c.b16 %v948, %v947
  %v1098 = vpack.c.b16 %v950, %v949
  %v1099 = vpack.c.b16 %v952, %v951
  %v1100 = vpack.c.b16 %v954, %v953
  %v1101 = vpack.c.b16 %v956, %v955
  %v1102 = vpack.c.b16 %v958, %v957
  %v1103 = vpack.c.b16 %v960, %v959
  %v1104 = vpack.c.b16 %v962, %v961
  %v1105 = vpack.c.b16 %v964, %v963
  %v1106 = vpack.c.b16 %v966, %v965
  %v1107 = vpack.c.b16 %v968, %v967
  %v1108 = vpack.c.b16 %v970, %v969
  %v1109 = vpack.c.b16 %v972, %v971
  %v1110 = vpack.c.b16 %v974, %v973
  %v1111 = vpack.c.b16 %v976, %v975
  %v1112 = vpack.c.b16 %v978, %v977
  %v1113 = vpack.c.b16 %v980, %v979
  %v1114 = vpack.c.b16 %v982, %v981
  %v1115 = vpack.c.b16 %v984, %v983
  %v1116 = vpack.c.b16 %v986, %v985
  %v1117 = vpack.c.b16 %v988, %v987
  %v1118 = vpack.c.b16 %v990, %v989
  %1247 = vmatprep.subr.bf16.mxu0 0
  %1248 = vmatpush1.bf16.msra.mxu0 %v998
  %1249 = vmatprep.subr.bf16.mxu0 0
  %1250 = vmatpush1.bf16.msra.mxu0 %v997
  %1251 = vmatprep.subr.bf16.mxu0 0
  %1252 = vmatpush1.bf16.msra.mxu0 %v996
  %1253 = vmatprep.subr.bf16.mxu0 0
  %1254 = vmatpush1.bf16.msra.mxu0 %v995
  %1255 = vmatprep.subr.bf16.mxu0 0
  %1256 = vmatpush1.bf16.msra.mxu0 %v994
  %1257 = vmatprep.subr.bf16.mxu0 0
  %1258 = vmatpush1.bf16.msra.mxu0 %v993
  %1259 = vmatprep.subr.bf16.mxu0 0
  %1260 = vmatpush1.bf16.msra.mxu0 %v992
  %1261 = vmatprep.subr.bf16.mxu0 0
  %1262 = vmatpush1.bf16.msra.mxu0 %v991
  %1263 = vmatprep.subr.bf16.mxu0 0
  %1264 = vmatpush2.bf16.msra.mxu0 %v1006
  %1265 = vmatprep.subr.bf16.mxu0 0
  %1266 = vmatpush2.bf16.msra.mxu0 %v1005
  %1267 = vmatprep.subr.bf16.mxu0 0
  %1268 = vmatpush2.bf16.msra.mxu0 %v1004
  %1269 = vmatprep.subr.bf16.mxu0 0
  %1270 = vmatpush2.bf16.msra.mxu0 %v1003
  %1271 = vmatprep.subr.bf16.mxu0 0
  %1272 = vmatpush2.bf16.msra.mxu0 %v1002
  %1273 = vmatprep.subr.bf16.mxu0 0
  %1274 = vmatpush2.bf16.msra.mxu0 %v1001
  %1275 = vmatprep.subr.bf16.mxu0 0
  %1276 = vmatpush2.bf16.msra.mxu0 %v1000
  %1277 = vmatprep.subr.bf16.mxu0 0
  %1278 = vmatpush2.bf16.msra.mxu0 %v999
  %1279 = vmatprep.mubr.bf16.mxu0 %v416
  %1280 = vmatmul.mubr.bf16.gmra.mxu0 %v415
  %v1281 = vpop.f32.mrf.mxu0
  %v1282 = vadd.f32 %v317, %v1281
  %v1283 = vpop.f32.mrf.mxu0
  %v1284 = vpop.f32.mrf.mxu0
  %v1285 = vadd.f32 %v317, %v1284
  %v1286 = vpop.f32.mrf.mxu0
  %1287 = vmatprep.mubr.bf16.mxu0 %v432
  %1288 = vmatmul.mubr.bf16.gmra.mxu0 %v431
  %v1289 = vpop.f32.mrf.mxu0
  %v1290 = vadd.f32 %v317, %v1289
  %v1291 = vpop.f32.mrf.mxu0
  %v1292 = vpop.f32.mrf.mxu0
  %v1293 = vadd.f32 %v317, %v1292
  %v1294 = vpop.f32.mrf.mxu0
  %1295 = vdwg.mxu0
  %1296 = vmatprep.subr.bf16.mxu0 0
  %1297 = vmatpush1.bf16.msra.mxu0 %v1014
  %1298 = vmatprep.subr.bf16.mxu0 0
  %1299 = vmatpush1.bf16.msra.mxu0 %v1013
  %1300 = vmatprep.subr.bf16.mxu0 0
  %1301 = vmatpush1.bf16.msra.mxu0 %v1012
  %1302 = vmatprep.subr.bf16.mxu0 0
  %1303 = vmatpush1.bf16.msra.mxu0 %v1011
  %1304 = vmatprep.subr.bf16.mxu0 0
  %1305 = vmatpush1.bf16.msra.mxu0 %v1010
  %1306 = vmatprep.subr.bf16.mxu0 0
  %1307 = vmatpush1.bf16.msra.mxu0 %v1009
  %1308 = vmatprep.subr.bf16.mxu0 0
  %1309 = vmatpush1.bf16.msra.mxu0 %v1008
  %1310 = vmatprep.subr.bf16.mxu0 0
  %1311 = vmatpush1.bf16.msra.mxu0 %v1007
  %1312 = vmatprep.subr.bf16.mxu0 0
  %1313 = vmatpush2.bf16.msra.mxu0 %v1022
  %1314 = vmatprep.subr.bf16.mxu0 0
  %1315 = vmatpush2.bf16.msra.mxu0 %v1021
  %1316 = vmatprep.subr.bf16.mxu0 0
  %1317 = vmatpush2.bf16.msra.mxu0 %v1020
  %1318 = vmatprep.subr.bf16.mxu0 0
  %1319 = vmatpush2.bf16.msra.mxu0 %v1019
  %1320 = vmatprep.subr.bf16.mxu0 0
  %1321 = vmatpush2.bf16.msra.mxu0 %v1018
  %1322 = vmatprep.subr.bf16.mxu0 0
  %1323 = vmatpush2.bf16.msra.mxu0 %v1017
  %1324 = vmatprep.subr.bf16.mxu0 0
  %1325 = vmatpush2.bf16.msra.mxu0 %v1016
  %1326 = vmatprep.subr.bf16.mxu0 0
  %1327 = vmatpush2.bf16.msra.mxu0 %v1015
  %1328 = vmatprep.mubr.bf16.mxu0 %v418
  %1329 = vmatmul.mubr.bf16.gmra.mxu0 %v417
  %v1330 = vpop.f32.mrf.mxu0
  %v1331 = vadd.f32 %v1282, %v1330
  %v1332 = vpop.f32.mrf.mxu0
  %v1333 = vpop.f32.mrf.mxu0
  %v1334 = vadd.f32 %v1285, %v1333
  %v1335 = vpop.f32.mrf.mxu0
  %1336 = vmatprep.mubr.bf16.mxu0 %v434
  %1337 = vmatmul.mubr.bf16.gmra.mxu0 %v433
  %v1338 = vpop.f32.mrf.mxu0
  %v1339 = vadd.f32 %v1290, %v1338
  %v1340 = vpop.f32.mrf.mxu0
  %v1341 = vpop.f32.mrf.mxu0
  %v1342 = vadd.f32 %v1293, %v1341
  %v1343 = vpop.f32.mrf.mxu0
  %1344 = vdwg.mxu0
  %1345 = vmatprep.subr.bf16.mxu0 0
  %1346 = vmatpush1.bf16.msra.mxu0 %v1030
  %1347 = vmatprep.subr.bf16.mxu0 0
  %1348 = vmatpush1.bf16.msra.mxu0 %v1029
  %1349 = vmatprep.subr.bf16.mxu0 0
  %1350 = vmatpush1.bf16.msra.mxu0 %v1028
  %1351 = vmatprep.subr.bf16.mxu0 0
  %1352 = vmatpush1.bf16.msra.mxu0 %v1027
  %1353 = vmatprep.subr.bf16.mxu0 0
  %1354 = vmatpush1.bf16.msra.mxu0 %v1026
  %1355 = vmatprep.subr.bf16.mxu0 0
  %1356 = vmatpush1.bf16.msra.mxu0 %v1025
  %1357 = vmatprep.subr.bf16.mxu0 0
  %1358 = vmatpush1.bf16.msra.mxu0 %v1024
  %1359 = vmatprep.subr.bf16.mxu0 0
  %1360 = vmatpush1.bf16.msra.mxu0 %v1023
  %1361 = vmatprep.subr.bf16.mxu0 0
  %1362 = vmatpush2.bf16.msra.mxu0 %v1038
  %1363 = vmatprep.subr.bf16.mxu0 0
  %1364 = vmatpush2.bf16.msra.mxu0 %v1037
  %1365 = vmatprep.subr.bf16.mxu0 0
  %1366 = vmatpush2.bf16.msra.mxu0 %v1036
  %1367 = vmatprep.subr.bf16.mxu0 0
  %1368 = vmatpush2.bf16.msra.mxu0 %v1035
  %1369 = vmatprep.subr.bf16.mxu0 0
  %1370 = vmatpush2.bf16.msra.mxu0 %v1034
  %1371 = vmatprep.subr.bf16.mxu0 0
  %1372 = vmatpush2.bf16.msra.mxu0 %v1033
  %1373 = vmatprep.subr.bf16.mxu0 0
  %1374 = vmatpush2.bf16.msra.mxu0 %v1032
  %1375 = vmatprep.subr.bf16.mxu0 0
  %1376 = vmatpush2.bf16.msra.mxu0 %v1031
  %1377 = vmatprep.mubr.bf16.mxu0 %v420
  %1378 = vmatmul.mubr.bf16.gmra.mxu0 %v419
  %v1379 = vpop.f32.mrf.mxu0
  %v1380 = vadd.f32 %v1331, %v1379
  %v1381 = vpop.f32.mrf.mxu0
  %v1382 = vpop.f32.mrf.mxu0
  %v1383 = vadd.f32 %v1334, %v1382
  %v1384 = vpop.f32.mrf.mxu0
  %1385 = vmatprep.mubr.bf16.mxu0 %v436
  %1386 = vmatmul.mubr.bf16.gmra.mxu0 %v435
  %v1387 = vpop.f32.mrf.mxu0
  %v1388 = vadd.f32 %v1339, %v1387
  %v1389 = vpop.f32.mrf.mxu0
  %v1390 = vpop.f32.mrf.mxu0
  %v1391 = vadd.f32 %v1342, %v1390
  %v1392 = vpop.f32.mrf.mxu0
  %1393 = vdwg.mxu0
  %1394 = vmatprep.subr.bf16.mxu0 0
  %1395 = vmatpush1.bf16.msra.mxu0 %v1046
  %1396 = vmatprep.subr.bf16.mxu0 0
  %1397 = vmatpush1.bf16.msra.mxu0 %v1045
  %1398 = vmatprep.subr.bf16.mxu0 0
  %1399 = vmatpush1.bf16.msra.mxu0 %v1044
  %1400 = vmatprep.subr.bf16.mxu0 0
  %1401 = vmatpush1.bf16.msra.mxu0 %v1043
  %1402 = vmatprep.subr.bf16.mxu0 0
  %1403 = vmatpush1.bf16.msra.mxu0 %v1042
  %1404 = vmatprep.subr.bf16.mxu0 0
  %1405 = vmatpush1.bf16.msra.mxu0 %v1041
  %1406 = vmatprep.subr.bf16.mxu0 0
  %1407 = vmatpush1.bf16.msra.mxu0 %v1040
  %1408 = vmatprep.subr.bf16.mxu0 0
  %1409 = vmatpush1.bf16.msra.mxu0 %v1039
  %1410 = vmatprep.subr.bf16.mxu0 0
  %1411 = vmatpush2.bf16.msra.mxu0 %v1054
  %1412 = vmatprep.subr.bf16.mxu0 0
  %1413 = vmatpush2.bf16.msra.mxu0 %v1053
  %1414 = vmatprep.subr.bf16.mxu0 0
  %1415 = vmatpush2.bf16.msra.mxu0 %v1052
  %1416 = vmatprep.subr.bf16.mxu0 0
  %1417 = vmatpush2.bf16.msra.mxu0 %v1051
  %1418 = vmatprep.subr.bf16.mxu0 0
  %1419 = vmatpush2.bf16.msra.mxu0 %v1050
  %1420 = vmatprep.subr.bf16.mxu0 0
  %1421 = vmatpush2.bf16.msra.mxu0 %v1049
  %1422 = vmatprep.subr.bf16.mxu0 0
  %1423 = vmatpush2.bf16.msra.mxu0 %v1048
  %1424 = vmatprep.subr.bf16.mxu0 0
  %1425 = vmatpush2.bf16.msra.mxu0 %v1047
  %1426 = vmatprep.mubr.bf16.mxu0 %v422
  %1427 = vmatmul.mubr.bf16.gmra.mxu0 %v421
  %v1428 = vpop.f32.mrf.mxu0
  %v1429 = vadd.f32 %v1380, %v1428
  %v1430 = vpop.f32.mrf.mxu0
  %v1431 = vpop.f32.mrf.mxu0
  %v1432 = vadd.f32 %v1383, %v1431
  %v1433 = vpop.f32.mrf.mxu0
  %1434 = vmatprep.mubr.bf16.mxu0 %v438
  %1435 = vmatmul.mubr.bf16.gmra.mxu0 %v437
  %v1436 = vpop.f32.mrf.mxu0
  %v1437 = vadd.f32 %v1388, %v1436
  %v1438 = vpop.f32.mrf.mxu0
  %v1439 = vpop.f32.mrf.mxu0
  %v1440 = vadd.f32 %v1391, %v1439
  %v1441 = vpop.f32.mrf.mxu0
  %1442 = vdwg.mxu0
  %1443 = vmatprep.subr.bf16.mxu0 0
  %1444 = vmatpush1.bf16.msra.mxu0 %v1062
  %1445 = vmatprep.subr.bf16.mxu0 0
  %1446 = vmatpush1.bf16.msra.mxu0 %v1061
  %1447 = vmatprep.subr.bf16.mxu0 0
  %1448 = vmatpush1.bf16.msra.mxu0 %v1060
  %1449 = vmatprep.subr.bf16.mxu0 0
  %1450 = vmatpush1.bf16.msra.mxu0 %v1059
  %1451 = vmatprep.subr.bf16.mxu0 0
  %1452 = vmatpush1.bf16.msra.mxu0 %v1058
  %1453 = vmatprep.subr.bf16.mxu0 0
  %1454 = vmatpush1.bf16.msra.mxu0 %v1057
  %1455 = vmatprep.subr.bf16.mxu0 0
  %1456 = vmatpush1.bf16.msra.mxu0 %v1056
  %1457 = vmatprep.subr.bf16.mxu0 0
  %1458 = vmatpush1.bf16.msra.mxu0 %v1055
  %1459 = vmatprep.subr.bf16.mxu0 0
  %1460 = vmatpush2.bf16.msra.mxu0 %v1070
  %1461 = vmatprep.subr.bf16.mxu0 0
  %1462 = vmatpush2.bf16.msra.mxu0 %v1069
  %1463 = vmatprep.subr.bf16.mxu0 0
  %1464 = vmatpush2.bf16.msra.mxu0 %v1068
  %1465 = vmatprep.subr.bf16.mxu0 0
  %1466 = vmatpush2.bf16.msra.mxu0 %v1067
  %1467 = vmatprep.subr.bf16.mxu0 0
  %1468 = vmatpush2.bf16.msra.mxu0 %v1066
  %1469 = vmatprep.subr.bf16.mxu0 0
  %1470 = vmatpush2.bf16.msra.mxu0 %v1065
  %1471 = vmatprep.subr.bf16.mxu0 0
  %1472 = vmatpush2.bf16.msra.mxu0 %v1064
  %1473 = vmatprep.subr.bf16.mxu0 0
  %1474 = vmatpush2.bf16.msra.mxu0 %v1063
  %1475 = vmatprep.mubr.bf16.mxu0 %v424
  %1476 = vmatmul.mubr.bf16.gmra.mxu0 %v423
  %v1477 = vpop.f32.mrf.mxu0
  %v1478 = vadd.f32 %v1429, %v1477
  %v1479 = vpop.f32.mrf.mxu0
  %v1480 = vpop.f32.mrf.mxu0
  %v1481 = vadd.f32 %v1432, %v1480
  %v1482 = vpop.f32.mrf.mxu0
  %1483 = vmatprep.mubr.bf16.mxu0 %v440
  %1484 = vmatmul.mubr.bf16.gmra.mxu0 %v439
  %v1485 = vpop.f32.mrf.mxu0
  %v1486 = vadd.f32 %v1437, %v1485
  %v1487 = vpop.f32.mrf.mxu0
  %v1488 = vpop.f32.mrf.mxu0
  %v1489 = vadd.f32 %v1440, %v1488
  %v1490 = vpop.f32.mrf.mxu0
  %1491 = vdwg.mxu0
  %1492 = vmatprep.subr.bf16.mxu0 0
  %1493 = vmatpush1.bf16.msra.mxu0 %v1078
  %1494 = vmatprep.subr.bf16.mxu0 0
  %1495 = vmatpush1.bf16.msra.mxu0 %v1077
  %1496 = vmatprep.subr.bf16.mxu0 0
  %1497 = vmatpush1.bf16.msra.mxu0 %v1076
  %1498 = vmatprep.subr.bf16.mxu0 0
  %1499 = vmatpush1.bf16.msra.mxu0 %v1075
  %1500 = vmatprep.subr.bf16.mxu0 0
  %1501 = vmatpush1.bf16.msra.mxu0 %v1074
  %1502 = vmatprep.subr.bf16.mxu0 0
  %1503 = vmatpush1.bf16.msra.mxu0 %v1073
  %1504 = vmatprep.subr.bf16.mxu0 0
  %1505 = vmatpush1.bf16.msra.mxu0 %v1072
  %1506 = vmatprep.subr.bf16.mxu0 0
  %1507 = vmatpush1.bf16.msra.mxu0 %v1071
  %1508 = vmatprep.subr.bf16.mxu0 0
  %1509 = vmatpush2.bf16.msra.mxu0 %v1086
  %1510 = vmatprep.subr.bf16.mxu0 0
  %1511 = vmatpush2.bf16.msra.mxu0 %v1085
  %1512 = vmatprep.subr.bf16.mxu0 0
  %1513 = vmatpush2.bf16.msra.mxu0 %v1084
  %1514 = vmatprep.subr.bf16.mxu0 0
  %1515 = vmatpush2.bf16.msra.mxu0 %v1083
  %1516 = vmatprep.subr.bf16.mxu0 0
  %1517 = vmatpush2.bf16.msra.mxu0 %v1082
  %1518 = vmatprep.subr.bf16.mxu0 0
  %1519 = vmatpush2.bf16.msra.mxu0 %v1081
  %1520 = vmatprep.subr.bf16.mxu0 0
  %1521 = vmatpush2.bf16.msra.mxu0 %v1080
  %1522 = vmatprep.subr.bf16.mxu0 0
  %1523 = vmatpush2.bf16.msra.mxu0 %v1079
  %1524 = vmatprep.mubr.bf16.mxu0 %v426
  %1525 = vmatmul.mubr.bf16.gmra.mxu0 %v425
  %v1526 = vpop.f32.mrf.mxu0
  %v1527 = vadd.f32 %v1478, %v1526
  %v1528 = vpop.f32.mrf.mxu0
  %v1529 = vpop.f32.mrf.mxu0
  %v1530 = vadd.f32 %v1481, %v1529
  %v1531 = vpop.f32.mrf.mxu0
  %1532 = vmatprep.mubr.bf16.mxu0 %v442
  %1533 = vmatmul.mubr.bf16.gmra.mxu0 %v441
  %v1534 = vpop.f32.mrf.mxu0
  %v1535 = vadd.f32 %v1486, %v1534
  %v1536 = vpop.f32.mrf.mxu0
  %v1537 = vpop.f32.mrf.mxu0
  %v1538 = vadd.f32 %v1489, %v1537
  %v1539 = vpop.f32.mrf.mxu0
  %1540 = vdwg.mxu0
  %1541 = vmatprep.subr.bf16.mxu0 0
  %1542 = vmatpush1.bf16.msra.mxu0 %v1094
  %1543 = vmatprep.subr.bf16.mxu0 0
  %1544 = vmatpush1.bf16.msra.mxu0 %v1093
  %1545 = vmatprep.subr.bf16.mxu0 0
  %1546 = vmatpush1.bf16.msra.mxu0 %v1092
  %1547 = vmatprep.subr.bf16.mxu0 0
  %1548 = vmatpush1.bf16.msra.mxu0 %v1091
  %1549 = vmatprep.subr.bf16.mxu0 0
  %1550 = vmatpush1.bf16.msra.mxu0 %v1090
  %1551 = vmatprep.subr.bf16.mxu0 0
  %1552 = vmatpush1.bf16.msra.mxu0 %v1089
  %1553 = vmatprep.subr.bf16.mxu0 0
  %1554 = vmatpush1.bf16.msra.mxu0 %v1088
  %1555 = vmatprep.subr.bf16.mxu0 0
  %1556 = vmatpush1.bf16.msra.mxu0 %v1087
  %1557 = vmatprep.subr.bf16.mxu0 0
  %1558 = vmatpush2.bf16.msra.mxu0 %v1102
  %1559 = vmatprep.subr.bf16.mxu0 0
  %1560 = vmatpush2.bf16.msra.mxu0 %v1101
  %1561 = vmatprep.subr.bf16.mxu0 0
  %1562 = vmatpush2.bf16.msra.mxu0 %v1100
  %1563 = vmatprep.subr.bf16.mxu0 0
  %1564 = vmatpush2.bf16.msra.mxu0 %v1099
  %1565 = vmatprep.subr.bf16.mxu0 0
  %1566 = vmatpush2.bf16.msra.mxu0 %v1098
  %1567 = vmatprep.subr.bf16.mxu0 0
  %1568 = vmatpush2.bf16.msra.mxu0 %v1097
  %1569 = vmatprep.subr.bf16.mxu0 0
  %1570 = vmatpush2.bf16.msra.mxu0 %v1096
  %1571 = vmatprep.subr.bf16.mxu0 0
  %1572 = vmatpush2.bf16.msra.mxu0 %v1095
  %1573 = vmatprep.mubr.bf16.mxu0 %v428
  %1574 = vmatmul.mubr.bf16.gmra.mxu0 %v427
  %v1575 = vpop.f32.mrf.mxu0
  %v1576 = vadd.f32 %v1527, %v1575
  %v1577 = vpop.f32.mrf.mxu0
  %v1578 = vpop.f32.mrf.mxu0
  %v1579 = vadd.f32 %v1530, %v1578
  %v1580 = vpop.f32.mrf.mxu0
  %1581 = vmatprep.mubr.bf16.mxu0 %v444
  %1582 = vmatmul.mubr.bf16.gmra.mxu0 %v443
  %v1583 = vpop.f32.mrf.mxu0
  %v1584 = vadd.f32 %v1535, %v1583
  %v1585 = vpop.f32.mrf.mxu0
  %v1586 = vpop.f32.mrf.mxu0
  %v1587 = vadd.f32 %v1538, %v1586
  %v1588 = vpop.f32.mrf.mxu0
  %1589 = vdwg.mxu0
  %1590 = vmatprep.subr.bf16.mxu0 0
  %1591 = vmatpush1.bf16.msra.mxu0 %v1110
  %1592 = vmatprep.subr.bf16.mxu0 0
  %1593 = vmatpush1.bf16.msra.mxu0 %v1109
  %1594 = vmatprep.subr.bf16.mxu0 0
  %1595 = vmatpush1.bf16.msra.mxu0 %v1108
  %1596 = vmatprep.subr.bf16.mxu0 0
  %1597 = vmatpush1.bf16.msra.mxu0 %v1107
  %1598 = vmatprep.subr.bf16.mxu0 0
  %1599 = vmatpush1.bf16.msra.mxu0 %v1106
  %1600 = vmatprep.subr.bf16.mxu0 0
  %1601 = vmatpush1.bf16.msra.mxu0 %v1105
  %1602 = vmatprep.subr.bf16.mxu0 0
  %1603 = vmatpush1.bf16.msra.mxu0 %v1104
  %1604 = vmatprep.subr.bf16.mxu0 0
  %1605 = vmatpush1.bf16.msra.mxu0 %v1103
  %1606 = vmatprep.subr.bf16.mxu0 0
  %1607 = vmatpush2.bf16.msra.mxu0 %v1118
  %1608 = vmatprep.subr.bf16.mxu0 0
  %1609 = vmatpush2.bf16.msra.mxu0 %v1117
  %1610 = vmatprep.subr.bf16.mxu0 0
  %1611 = vmatpush2.bf16.msra.mxu0 %v1116
  %1612 = vmatprep.subr.bf16.mxu0 0
  %1613 = vmatpush2.bf16.msra.mxu0 %v1115
  %1614 = vmatprep.subr.bf16.mxu0 0
  %1615 = vmatpush2.bf16.msra.mxu0 %v1114
  %1616 = vmatprep.subr.bf16.mxu0 0
  %1617 = vmatpush2.bf16.msra.mxu0 %v1113
  %1618 = vmatprep.subr.bf16.mxu0 0
  %1619 = vmatpush2.bf16.msra.mxu0 %v1112
  %1620 = vmatprep.subr.bf16.mxu0 0
  %1621 = vmatpush2.bf16.msra.mxu0 %v1111
  %1622 = vmatprep.mubr.bf16.mxu0 %v430
  %1623 = vmatmul.mubr.bf16.gmra.mxu0 %v429
  %v1624 = vpop.f32.mrf.mxu0
  %v1625 = vadd.f32 %v1576, %v1624
  %v1626 = vpop.f32.mrf.mxu0
  %v1627 = vpop.f32.mrf.mxu0
  %v1628 = vadd.f32 %v1579, %v1627
  %v1629 = vpop.f32.mrf.mxu0
  %1630 = vmatprep.mubr.bf16.mxu0 %v446
  %1631 = vmatmul.mubr.bf16.gmra.mxu0 %v445
  %v1632 = vpop.f32.mrf.mxu0
  %v1633 = vadd.f32 %v1584, %v1632
  %v1634 = vpop.f32.mrf.mxu0
  %v1635 = vpop.f32.mrf.mxu0
  %v1636 = vadd.f32 %v1587, %v1635
  %v1637 = vpop.f32.mrf.mxu0
  %1638 = vdwg.mxu0
  %v1639 = vmax.f32 %v1625, 0.0
  %v1640 = vmax.f32 %v1628, 0.0
  %v1641 = vmax.f32 %v1633, 0.0
  %v1642 = vmax.f32 %v1636, 0.0
  %v1643 = vld [vmem:[%s3] sm:$0xff]
  %v1644 = vld [vmem:[%s3 + $0x8] sm:$0xff]
  %v1645 = vld [vmem:[%s3 + $0x10] sm:$0xff]
  %v1646 = vld [vmem:[%s3 + $0x18] sm:$0xff]
  %v1647 = vld [vmem:[%s4] sm:$0x1]
  %v1648 = vld [vmem:[%s5] sm:$0x1]
  %v1649 = vmul.f32 %v1639, %v1639
  %v1650 = vmul.f32 %v1640, %v1640
  %v1651 = vmul.f32 %v1641, %v1641
  %v1652 = vmul.f32 %v1642, %v1642
  %1653 = vadd.xlane.f32.xlu0 %v1649
  %v1654 = vpop.xlane.xlu0 %1653
  %1655 = vadd.xlane.f32.xlu0 %v1650
  %v1656 = vpop.xlane.xlu0 %1655
  %1657 = vadd.xlane.f32.xlu0 %v1651
  %v1658 = vpop.xlane.xlu0 %1657
  %1659 = vadd.xlane.f32.xlu0 %v1652
  %v1660 = vpop.xlane.xlu0 %1659
  %1661 = vmatprep.subr.mxu0 0.0
  %1662 = vmatpush1.xpose.msra.mxu0 0.0
  %1663 = vmatprep.subr.mxu0 0.0
  %1664 = vmatpush1.xpose.msra.mxu0 0.0
  %1665 = vmatprep.subr.mxu0 0.0
  %1666 = vmatpush1.xpose.msra.mxu0 0.0
  %1667 = vmatprep.subr.mxu0 0.0
  %1668 = vmatpush1.xpose.msra.mxu0 0.0
  %1669 = vmatprep.subr.mxu0 0.0
  %1670 = vmatpush1.xpose.msra.mxu0 0.0
  %1671 = vmatprep.subr.mxu0 0.0
  %1672 = vmatpush1.xpose.msra.mxu0 0.0
  %1673 = vmatprep.subr.mxu0 0.0
  %1674 = vmatpush1.xpose.msra.mxu0 0.0
  %1675 = vmatprep.subr.mxu0 0.0
  %1676 = vmatpush1.xpose.msra.mxu0 0.0
  %1677 = vmatprep.subr.mxu0 0.0
  %1678 = vmatpush1.xpose.msra.mxu0 0.0
  %1679 = vmatprep.subr.mxu0 0.0
  %1680 = vmatpush1.xpose.msra.mxu0 0.0
  %1681 = vmatprep.subr.mxu0 0.0
  %1682 = vmatpush1.xpose.msra.mxu0 0.0
  %1683 = vmatprep.subr.mxu0 0.0
  %1684 = vmatpush1.xpose.msra.mxu0 0.0
  %1685 = vmatprep.subr.mxu0 0.0
  %1686 = vmatpush1.xpose.msra.mxu0 %v1646
  %1687 = vmatprep.subr.mxu0 0.0
  %1688 = vmatpush1.xpose.msra.mxu0 %v1645
  %1689 = vmatprep.subr.mxu0 0.0
  %1690 = vmatpush1.xpose.msra.mxu0 %v1644
  %1691 = vmatprep.subr.mxu0 0.0
  %1692 = vmatpush1.xpose.msra.mxu0 %v1643
  %1693 = vmatprep.subr.mxu0 0.0
  %1694 = vmatpush2.xpose.msra.mxu0 0.0
  %1695 = vmatprep.subr.mxu0 0.0
  %1696 = vmatpush2.xpose.msra.mxu0 0.0
  %1697 = vmatprep.subr.mxu0 0.0
  %1698 = vmatpush2.xpose.msra.mxu0 0.0
  %1699 = vmatprep.subr.mxu0 0.0
  %1700 = vmatpush2.xpose.msra.mxu0 0.0
  %1701 = vmatprep.subr.mxu0 0.0
  %1702 = vmatpush2.xpose.msra.mxu0 0.0
  %1703 = vmatprep.subr.mxu0 0.0
  %1704 = vmatpush2.xpose.msra.mxu0 0.0
  %1705 = vmatprep.subr.mxu0 0.0
  %1706 = vmatpush2.xpose.msra.mxu0 0.0
  %1707 = vmatprep.subr.mxu0 0.0
  %1708 = vmatpush2.xpose.msra.mxu0 0.0
  %1709 = vmatprep.subr.mxu0 0.0
  %1710 = vmatpush2.xpose.msra.mxu0 0.0
  %1711 = vmatprep.subr.mxu0 0.0
  %1712 = vmatpush2.xpose.msra.mxu0 0.0
  %1713 = vmatprep.subr.mxu0 0.0
  %1714 = vmatpush2.xpose.msra.mxu0 0.0
  %1715 = vmatprep.subr.mxu0 0.0
  %1716 = vmatpush2.xpose.msra.mxu0 0.0
  %1717 = vmatprep.subr.mxu0 0.0
  %1718 = vmatpush2.xpose.msra.mxu0 0.0
  %1719 = vmatprep.subr.mxu0 0.0
  %1720 = vmatpush2.xpose.msra.mxu0 0.0
  %1721 = vmatprep.subr.mxu0 0.0
  %1722 = vmatpush2.xpose.msra.mxu0 0.0
  %1723 = vmatprep.subr.mxu0 0.0
  %1724 = vmatpush2.xpose.msra.mxu0 0.0
  %1725 = vmatprep.mubr.f32.mxu0 0.0
  %1726 = vmatmul.mubr.f32.gmra.mxu0 %v1639
  %v1727 = vpop.f32.mrf.mxu0
  %v1728 = vadd.f32 0.0, %v1727
  %v1729 = vpop.f32.mrf.mxu0
  %1730 = vmatprep.mubr.f32.mxu0 0.0
  %1731 = vmatmul.mubr.f32.gmra.mxu0 %v1640
  %v1732 = vpop.f32.mrf.mxu0
  %v1733 = vadd.f32 0.0, %v1732
  %v1734 = vpop.f32.mrf.mxu0
  %1735 = vmatprep.mubr.f32.mxu0 0.0
  %1736 = vmatmul.mubr.f32.gmra.mxu0 %v1641
  %v1737 = vpop.f32.mrf.mxu0
  %v1738 = vadd.f32 0.0, %v1737
  %v1739 = vpop.f32.mrf.mxu0
  %1740 = vmatprep.mubr.f32.mxu0 0.0
  %1741 = vmatmul.mubr.f32.gmra.mxu0 %v1642
  %v1742 = vpop.f32.mrf.mxu0
  %v1743 = vadd.f32 0.0, %v1742
  %v1744 = vpop.f32.mrf.mxu0
  %1745 = vdwg.mxu0
  %v1747 = vlaneseq
  %v1748 = vshrl.u32 %v1747, 7
  %v1749 = vsub.s32 0, %v1748
  %v1750 = vrot.slane %v1648, %v1749
  %v1752 = vadd.f32 %v1654, %v1750
  %v1753 = vadd.f32 %v1656, %v1750
  %v1754 = vadd.f32 %v1658, %v1750
  %v1755 = vadd.f32 %v1660, %v1750
  %v1756 = vmul.f32 %v1728, 2.0
  %v1757 = vmul.f32 %v1733, 2.0
  %v1758 = vmul.f32 %v1738, 2.0
  %v1759 = vmul.f32 %v1743, 2.0
  %v1760 = vsub.f32 %v1752, %v1756
  %v1761 = vsub.f32 %v1753, %v1757
  %v1762 = vsub.f32 %v1754, %v1758
  %v1763 = vsub.f32 %v1755, %v1759
  %v1765 = vlaneseq
  %v1766 = vshrl.u32 %v1765, 7
  %v1767 = vsub.s32 0, %v1766
  %v1768 = vrot.slane %v1647, %v1767
  %v1770 = vmul.f32 %v1768, %v1760
  %v1771 = vmul.f32 %v1768, %v1761
  %v1772 = vmul.f32 %v1768, %v1762
  %v1773 = vmul.f32 %v1768, %v1763
  %vm1774 = vcmask 261120
  %v1775 = vsel %vm1774, %v1770, -inf
  %1776 = vmax.xlane.f32.xlu0 %v1775
  %v1777 = vpop.xlane.xlu0 %1776
  %v1778 = vsel %vm1774, %v1771, -inf
  %1779 = vmax.xlane.f32.xlu0 %v1778
  %v1780 = vpop.xlane.xlu0 %1779
  %v1781 = vsel %vm1774, %v1772, -inf
  %1782 = vmax.xlane.f32.xlu0 %v1781
  %v1783 = vpop.xlane.xlu0 %1782
  %v1784 = vsel %vm1774, %v1773, -inf
  %1785 = vmax.xlane.f32.xlu0 %v1784
  %v1786 = vpop.xlane.xlu0 %1785
  %v1787 = vsub.f32 %v1770, %v1777
  %v1788 = vsub.f32 %v1771, %v1780
  %v1789 = vsub.f32 %v1772, %v1783
  %v1790 = vsub.f32 %v1773, %v1786
  %v1791 = vmul.f32 %v1787, 1.442695
  %v1792 = vpow.pop %v1791
  %v1793 = vmul.f32 %v1788, 1.442695
  %v1794 = vpow.pop %v1793
  %v1795 = vmul.f32 %v1789, 1.442695
  %v1796 = vpow.pop %v1795
  %v1797 = vmul.f32 %v1790, 1.442695
  %v1798 = vpow.pop %v1797
  %v1799 = vsel %vm1774, %v1792, 0.0
  %1800 = vadd.xlane.f32.xlu0 %v1799
  %v1801 = vpop.xlane.xlu0 %1800
  %v1802 = vsel %vm1774, %v1794, 0.0
  %1803 = vadd.xlane.f32.xlu0 %v1802
  %v1804 = vpop.xlane.xlu0 %1803
  %v1805 = vsel %vm1774, %v1796, 0.0
  %1806 = vadd.xlane.f32.xlu0 %v1805
  %v1807 = vpop.xlane.xlu0 %1806
  %v1808 = vsel %vm1774, %v1798, 0.0
  %1809 = vadd.xlane.f32.xlu0 %v1808
  %v1810 = vpop.xlane.xlu0 %1809
  %v1811 = vrcp.pop %v1801
  %v1812 = vrcp.pop %v1804
  %v1813 = vrcp.pop %v1807
  %v1814 = vrcp.pop %v1810
  %v1815 = vmul.f32 %v1792, %v1811
  %v1816 = vmul.f32 %v1794, %v1812
  %v1817 = vmul.f32 %v1796, %v1813
  %v1818 = vmul.f32 %v1798, %v1814
  %1819 = vxpose.xlu0.b32.start [1/16] %v1815, 128
  %1820 = vxpose.xlu0.b32.cont [2/16] %v1816, 128
  %1821 = vxpose.xlu0.b32.cont [3/16] 0.0, 128
  %1822 = vxpose.xlu0.b32.cont [4/16] 0.0, 128
  %1823 = vxpose.xlu0.b32.cont [5/16] 0.0, 128
  %1824 = vxpose.xlu0.b32.cont [6/16] 0.0, 128
  %1825 = vxpose.xlu0.b32.cont [7/16] 0.0, 128
  %1826 = vxpose.xlu0.b32.cont [8/16] 0.0, 128
  %1827 = vxpose.xlu0.b32.cont [9/16] 0.0, 128
  %1828 = vxpose.xlu0.b32.cont [10/16] 0.0, 128
  %1829 = vxpose.xlu0.b32.cont [11/16] 0.0, 128
  %1830 = vxpose.xlu0.b32.cont [12/16] 0.0, 128
  %1831 = vxpose.xlu0.b32.cont [13/16] 0.0, 128
  %1832 = vxpose.xlu0.b32.cont [14/16] 0.0, 128
  %1833 = vxpose.xlu0.b32.cont [15/16] 0.0, 128
  %1834 = vxpose.xlu0.b32.end [16/16] 0.0, 128
  %v1835 = vpop.trf.xlu0
  %v1836 = vpop.trf.xlu0
  %v1837 = vpop.trf.xlu0
  %v1838 = vpop.trf.xlu0
  %v1839 = vpop.trf.xlu0
  %v1840 = vpop.trf.xlu0
  %v1841 = vpop.trf.xlu0
  %v1842 = vpop.trf.xlu0
  %v1843 = vpop.trf.xlu0
  %v1844 = vpop.trf.xlu0
  %v1845 = vpop.trf.xlu0
  %v1846 = vpop.trf.xlu0
  %v1847 = vpop.trf.xlu0
  %v1848 = vpop.trf.xlu0
  %v1849 = vpop.trf.xlu0
  %v1850 = vpop.trf.xlu0
  %vm1851 = vcmask 130048
  %v1853 = vsel %vm1851, %v1835, 0
  %v1856 = vsel %vm1851, %v1836, 0
  %v1859 = vsel %vm1851, %v1837, 0
  %v1862 = vsel %vm1851, %v1838, 0
  %1864 = vmatprep.subr.mxu0 0.0
  %1865 = vmatpush1.msra.mxu0 0.0
  %1866 = vmatprep.subr.mxu0 0.0
  %1867 = vmatpush1.msra.mxu0 0.0
  %1868 = vmatprep.subr.mxu0 0.0
  %1869 = vmatpush1.msra.mxu0 0.0
  %1870 = vmatprep.subr.mxu0 0.0
  %1871 = vmatpush1.msra.mxu0 0.0
  %1872 = vmatprep.subr.mxu0 0.0
  %1873 = vmatpush1.msra.mxu0 0.0
  %1874 = vmatprep.subr.mxu0 0.0
  %1875 = vmatpush1.msra.mxu0 0.0
  %1876 = vmatprep.subr.mxu0 0.0
  %1877 = vmatpush1.msra.mxu0 0.0
  %1878 = vmatprep.subr.mxu0 0.0
  %1879 = vmatpush1.msra.mxu0 0.0
  %1880 = vmatprep.subr.mxu0 0.0
  %1881 = vmatpush1.msra.mxu0 0.0
  %1882 = vmatprep.subr.mxu0 0.0
  %1883 = vmatpush1.msra.mxu0 0.0
  %1884 = vmatprep.subr.mxu0 0.0
  %1885 = vmatpush1.msra.mxu0 0.0
  %1886 = vmatprep.subr.mxu0 0.0
  %1887 = vmatpush1.msra.mxu0 0.0
  %1888 = vmatprep.subr.mxu0 0.0
  %1889 = vmatpush1.msra.mxu0 0.0
  %1890 = vmatprep.subr.mxu0 0.0
  %1891 = vmatpush1.msra.mxu0 0.0
  %1892 = vmatprep.subr.mxu0 0.0
  %1893 = vmatpush1.msra.mxu0 %v1640
  %1894 = vmatprep.subr.mxu0 0.0
  %1895 = vmatpush1.msra.mxu0 %v1639
  %1896 = vmatprep.subr.mxu0 0.0
  %1897 = vmatpush2.msra.mxu0 0.0
  %1898 = vmatprep.subr.mxu0 0.0
  %1899 = vmatpush2.msra.mxu0 0.0
  %1900 = vmatprep.subr.mxu0 0.0
  %1901 = vmatpush2.msra.mxu0 0.0
  %1902 = vmatprep.subr.mxu0 0.0
  %1903 = vmatpush2.msra.mxu0 0.0
  %1904 = vmatprep.subr.mxu0 0.0
  %1905 = vmatpush2.msra.mxu0 0.0
  %1906 = vmatprep.subr.mxu0 0.0
  %1907 = vmatpush2.msra.mxu0 0.0
  %1908 = vmatprep.subr.mxu0 0.0
  %1909 = vmatpush2.msra.mxu0 0.0
  %1910 = vmatprep.subr.mxu0 0.0
  %1911 = vmatpush2.msra.mxu0 0.0
  %1912 = vmatprep.subr.mxu0 0.0
  %1913 = vmatpush2.msra.mxu0 0.0
  %1914 = vmatprep.subr.mxu0 0.0
  %1915 = vmatpush2.msra.mxu0 0.0
  %1916 = vmatprep.subr.mxu0 0.0
  %1917 = vmatpush2.msra.mxu0 0.0
  %1918 = vmatprep.subr.mxu0 0.0
  %1919 = vmatpush2.msra.mxu0 0.0
  %1920 = vmatprep.subr.mxu0 0.0
  %1921 = vmatpush2.msra.mxu0 0.0
  %1922 = vmatprep.subr.mxu0 0.0
  %1923 = vmatpush2.msra.mxu0 0.0
  %1924 = vmatprep.subr.mxu0 0.0
  %1925 = vmatpush2.msra.mxu0 0.0
  %1926 = vmatprep.subr.mxu0 0.0
  %1927 = vmatpush2.msra.mxu0 0.0
  %1928 = vmatprep.mubr.f32.mxu0 0.0
  %1929 = vmatmul.mubr.f32.gmra.mxu0 %v1853
  %v1930 = vpop.f32.mrf.mxu0
  %v1931 = vadd.f32 0.0, %v1930
  %v1932 = vpop.f32.mrf.mxu0
  %1933 = vmatprep.mubr.f32.mxu0 0.0
  %1934 = vmatmul.mubr.f32.gmra.mxu0 %v1856
  %v1935 = vpop.f32.mrf.mxu0
  %v1936 = vadd.f32 0.0, %v1935
  %v1937 = vpop.f32.mrf.mxu0
  %1938 = vmatprep.mubr.f32.mxu0 0.0
  %1939 = vmatmul.mubr.f32.gmra.mxu0 %v1859
  %v1940 = vpop.f32.mrf.mxu0
  %v1941 = vadd.f32 0.0, %v1940
  %v1942 = vpop.f32.mrf.mxu0
  %1943 = vmatprep.mubr.f32.mxu0 0.0
  %1944 = vmatmul.mubr.f32.gmra.mxu0 %v1862
  %v1945 = vpop.f32.mrf.mxu0
  %v1946 = vadd.f32 0.0, %v1945
  %v1947 = vpop.f32.mrf.mxu0
  %1948 = vdwg.mxu0
  %1949 = vxpose.xlu0.b32.start [1/16] %v1817, 128
  %1950 = vxpose.xlu0.b32.cont [2/16] %v1818, 128
  %1951 = vxpose.xlu0.b32.cont [3/16] 0.0, 128
  %1952 = vxpose.xlu0.b32.cont [4/16] 0.0, 128
  %1953 = vxpose.xlu0.b32.cont [5/16] 0.0, 128
  %1954 = vxpose.xlu0.b32.cont [6/16] 0.0, 128
  %1955 = vxpose.xlu0.b32.cont [7/16] 0.0, 128
  %1956 = vxpose.xlu0.b32.cont [8/16] 0.0, 128
  %1957 = vxpose.xlu0.b32.cont [9/16] 0.0, 128
  %1958 = vxpose.xlu0.b32.cont [10/16] 0.0, 128
  %1959 = vxpose.xlu0.b32.cont [11/16] 0.0, 128
  %1960 = vxpose.xlu0.b32.cont [12/16] 0.0, 128
  %1961 = vxpose.xlu0.b32.cont [13/16] 0.0, 128
  %1962 = vxpose.xlu0.b32.cont [14/16] 0.0, 128
  %1963 = vxpose.xlu0.b32.cont [15/16] 0.0, 128
  %1964 = vxpose.xlu0.b32.end [16/16] 0.0, 128
  %v1965 = vpop.trf.xlu0
  %v1966 = vpop.trf.xlu0
  %v1967 = vpop.trf.xlu0
  %v1968 = vpop.trf.xlu0
  %v1969 = vpop.trf.xlu0
  %v1970 = vpop.trf.xlu0
  %v1971 = vpop.trf.xlu0
  %v1972 = vpop.trf.xlu0
  %v1973 = vpop.trf.xlu0
  %v1974 = vpop.trf.xlu0
  %v1975 = vpop.trf.xlu0
  %v1976 = vpop.trf.xlu0
  %v1977 = vpop.trf.xlu0
  %v1978 = vpop.trf.xlu0
  %v1979 = vpop.trf.xlu0
  %v1980 = vpop.trf.xlu0
  %v1982 = vsel %vm1851, %v1965, 0
  %v1985 = vsel %vm1851, %v1966, 0
  %v1988 = vsel %vm1851, %v1967, 0
  %v1991 = vsel %vm1851, %v1968, 0
  %1993 = vmatprep.subr.mxu0 0.0
  %1994 = vmatpush1.msra.mxu0 0.0
  %1995 = vmatprep.subr.mxu0 0.0
  %1996 = vmatpush1.msra.mxu0 0.0
  %1997 = vmatprep.subr.mxu0 0.0
  %1998 = vmatpush1.msra.mxu0 0.0
  %1999 = vmatprep.subr.mxu0 0.0
  %2000 = vmatpush1.msra.mxu0 0.0
  %2001 = vmatprep.subr.mxu0 0.0
  %2002 = vmatpush1.msra.mxu0 0.0
  %2003 = vmatprep.subr.mxu0 0.0
  %2004 = vmatpush1.msra.mxu0 0.0
  %2005 = vmatprep.subr.mxu0 0.0
  %2006 = vmatpush1.msra.mxu0 0.0
  %2007 = vmatprep.subr.mxu0 0.0
  %2008 = vmatpush1.msra.mxu0 0.0
  %2009 = vmatprep.subr.mxu0 0.0
  %2010 = vmatpush1.msra.mxu0 0.0
  %2011 = vmatprep.subr.mxu0 0.0
  %2012 = vmatpush1.msra.mxu0 0.0
  %2013 = vmatprep.subr.mxu0 0.0
  %2014 = vmatpush1.msra.mxu0 0.0
  %2015 = vmatprep.subr.mxu0 0.0
  %2016 = vmatpush1.msra.mxu0 0.0
  %2017 = vmatprep.subr.mxu0 0.0
  %2018 = vmatpush1.msra.mxu0 0.0
  %2019 = vmatprep.subr.mxu0 0.0
  %2020 = vmatpush1.msra.mxu0 0.0
  %2021 = vmatprep.subr.mxu0 0.0
  %2022 = vmatpush1.msra.mxu0 %v1642
  %2023 = vmatprep.subr.mxu0 0.0
  %2024 = vmatpush1.msra.mxu0 %v1641
  %2025 = vmatprep.subr.mxu0 0.0
  %2026 = vmatpush2.msra.mxu0 0.0
  %2027 = vmatprep.subr.mxu0 0.0
  %2028 = vmatpush2.msra.mxu0 0.0
  %2029 = vmatprep.subr.mxu0 0.0
  %2030 = vmatpush2.msra.mxu0 0.0
  %2031 = vmatprep.subr.mxu0 0.0
  %2032 = vmatpush2.msra.mxu0 0.0
  %2033 = vmatprep.subr.mxu0 0.0
  %2034 = vmatpush2.msra.mxu0 0.0
  %2035 = vmatprep.subr.mxu0 0.0
  %2036 = vmatpush2.msra.mxu0 0.0
  %2037 = vmatprep.subr.mxu0 0.0
  %2038 = vmatpush2.msra.mxu0 0.0
  %2039 = vmatprep.subr.mxu0 0.0
  %2040 = vmatpush2.msra.mxu0 0.0
  %2041 = vmatprep.subr.mxu0 0.0
  %2042 = vmatpush2.msra.mxu0 0.0
  %2043 = vmatprep.subr.mxu0 0.0
  %2044 = vmatpush2.msra.mxu0 0.0
  %2045 = vmatprep.subr.mxu0 0.0
  %2046 = vmatpush2.msra.mxu0 0.0
  %2047 = vmatprep.subr.mxu0 0.0
  %2048 = vmatpush2.msra.mxu0 0.0
  %2049 = vmatprep.subr.mxu0 0.0
  %2050 = vmatpush2.msra.mxu0 0.0
  %2051 = vmatprep.subr.mxu0 0.0
  %2052 = vmatpush2.msra.mxu0 0.0
  %2053 = vmatprep.subr.mxu0 0.0
  %2054 = vmatpush2.msra.mxu0 0.0
  %2055 = vmatprep.subr.mxu0 0.0
  %2056 = vmatpush2.msra.mxu0 0.0
  %2057 = vmatprep.mubr.f32.mxu0 0.0
  %2058 = vmatmul.mubr.f32.gmra.mxu0 %v1982
  %v2059 = vpop.f32.mrf.mxu0
  %v2060 = vadd.f32 0.0, %v2059
  %v2061 = vpop.f32.mrf.mxu0
  %2062 = vmatprep.mubr.f32.mxu0 0.0
  %2063 = vmatmul.mubr.f32.gmra.mxu0 %v1985
  %v2064 = vpop.f32.mrf.mxu0
  %v2065 = vadd.f32 0.0, %v2064
  %v2066 = vpop.f32.mrf.mxu0
  %2067 = vmatprep.mubr.f32.mxu0 0.0
  %2068 = vmatmul.mubr.f32.gmra.mxu0 %v1988
  %v2069 = vpop.f32.mrf.mxu0
  %v2070 = vadd.f32 0.0, %v2069
  %v2071 = vpop.f32.mrf.mxu0
  %2072 = vmatprep.mubr.f32.mxu0 0.0
  %2073 = vmatmul.mubr.f32.gmra.mxu0 %v1991
  %v2074 = vpop.f32.mrf.mxu0
  %v2075 = vadd.f32 0.0, %v2074
  %v2076 = vpop.f32.mrf.mxu0
  %2077 = vdwg.mxu0
  %v2078 = vsel %vm1774, %v1815, 0.0
  %v2079 = vsel %vm1774, %v1816, 0.0
  %v2080 = vadd.f32 %v2078, %v2079
  %v2081 = vrot.slane %v2080, 4
  %v2082 = vadd.f32 %v2080, %v2081
  %v2083 = vrot.slane %v2082, 2
  %v2084 = vadd.f32 %v2082, %v2083
  %v2085 = vrot.slane %v2084, 1
  %v2086 = vadd.f32 %v2084, %v2085
  %v2087 = vsel %vm1774, %v1817, 0.0
  %v2088 = vsel %vm1774, %v1818, 0.0
  %v2089 = vadd.f32 %v2087, %v2088
  %v2090 = vrot.slane %v2089, 4
  %v2091 = vadd.f32 %v2089, %v2090
  %v2092 = vrot.slane %v2091, 2
  %v2093 = vadd.f32 %v2091, %v2092
  %v2094 = vrot.slane %v2093, 1
  %v2095 = vadd.f32 %v2093, %v2094
  %2097 = vbcast.lane.b32.xlu0 %v2086, 256
  %v2098 = vpop.permute.xlu0 %2097
  %s2100 = sor.u32 256, 8
  %2101 = vbcast.lane.b32.xlu0 %v2086, %s2100
  %v2102 = vpop.permute.xlu0 %2101
  %s2104 = sor.u32 256, 16
  %2105 = vbcast.lane.b32.xlu0 %v2086, %s2104
  %v2106 = vpop.permute.xlu0 %2105
  %s2108 = sor.u32 256, 24
  %2109 = vbcast.lane.b32.xlu0 %v2086, %s2108
  %v2110 = vpop.permute.xlu0 %2109
  %2112 = vbcast.lane.b32.xlu0 %v2095, 256
  %v2113 = vpop.permute.xlu0 %2112
  %s2115 = sor.u32 256, 8
  %2116 = vbcast.lane.b32.xlu0 %v2095, %s2115
  %v2117 = vpop.permute.xlu0 %2116
  %s2119 = sor.u32 256, 16
  %2120 = vbcast.lane.b32.xlu0 %v2095, %s2119
  %v2121 = vpop.permute.xlu0 %2120
  %s2123 = sor.u32 256, 24
  %2124 = vbcast.lane.b32.xlu0 %v2095, %s2123
  %v2125 = vpop.permute.xlu0 %2124
  %v2126 = vmul.f32 %v2098, %v1643
  %v2127 = vmul.f32 %v2102, %v1644
  %v2128 = vmul.f32 %v2106, %v1645
  %v2129 = vmul.f32 %v2110, %v1646
  %v2130 = vmul.f32 %v2113, %v1643
  %v2131 = vmul.f32 %v2117, %v1644
  %v2132 = vmul.f32 %v2121, %v1645
  %v2133 = vmul.f32 %v2125, %v1646
  %v2134 = vsub.f32 %v1931, %v2126
  %v2135 = vsub.f32 %v1936, %v2127
  %v2136 = vsub.f32 %v1941, %v2128
  %v2137 = vsub.f32 %v1946, %v2129
  %v2138 = vsub.f32 %v2060, %v2130
  %v2139 = vsub.f32 %v2065, %v2131
  %v2140 = vsub.f32 %v2070, %v2132
  %v2141 = vsub.f32 %v2075, %v2133
  %v2142 = vmul.f32 %v2134, %v2134
  %v2143 = vmul.f32 %v2135, %v2135
  %v2144 = vmul.f32 %v2136, %v2136
  %v2145 = vmul.f32 %v2137, %v2137
  %v2146 = vmul.f32 %v2138, %v2138
  %v2147 = vmul.f32 %v2139, %v2139
  %v2148 = vmul.f32 %v2140, %v2140
  %v2149 = vmul.f32 %v2141, %v2141
  %2150 = vadd.xlane.f32.xlu0 %v2142
  %v2151 = vpop.xlane.xlu0 %2150
  %2152 = vadd.xlane.f32.xlu0 %v2143
  %v2153 = vpop.xlane.xlu0 %2152
  %2154 = vadd.xlane.f32.xlu0 %v2144
  %v2155 = vpop.xlane.xlu0 %2154
  %2156 = vadd.xlane.f32.xlu0 %v2145
  %v2157 = vpop.xlane.xlu0 %2156
  %2158 = vadd.xlane.f32.xlu0 %v2146
  %v2159 = vpop.xlane.xlu0 %2158
  %2160 = vadd.xlane.f32.xlu0 %v2147
  %v2161 = vpop.xlane.xlu0 %2160
  %2162 = vadd.xlane.f32.xlu0 %v2148
  %v2163 = vpop.xlane.xlu0 %2162
  %2164 = vadd.xlane.f32.xlu0 %v2149
  %v2165 = vpop.xlane.xlu0 %2164
  %v2166 = vadd.f32 %v2151, %v2153
  %v2167 = vadd.f32 %v2166, %v2155
  %v2168 = vadd.f32 %v2167, %v2157
  %v2169 = vrot.slane %v2168, 4
  %v2170 = vadd.f32 %v2168, %v2169
  %v2171 = vrot.slane %v2170, 2
  %v2172 = vadd.f32 %v2170, %v2171
  %v2173 = vrot.slane %v2172, 1
  %v2174 = vadd.f32 %v2172, %v2173
  %v2175 = vadd.f32 %v2159, %v2161
  %v2176 = vadd.f32 %v2175, %v2163
  %v2177 = vadd.f32 %v2176, %v2165
  %v2178 = vrot.slane %v2177, 4
  %v2179 = vadd.f32 %v2177, %v2178
  %v2180 = vrot.slane %v2179, 2
  %v2181 = vadd.f32 %v2179, %v2180
  %v2182 = vrot.slane %v2181, 1
  %v2183 = vadd.f32 %v2181, %v2182
  %v2184 = vmax.f32 %v2174, 1e-24
  %v2185 = vmax.f32 %v2183, 1e-24
  %v2186 = vrsqrt.pop %v2184
  %v2187 = vrsqrt.pop %v2185
  %v2188 = vmul.f32 %v2134, %v2186
  %v2189 = vmul.f32 %v2135, %v2186
  %v2190 = vmul.f32 %v2136, %v2186
  %v2191 = vmul.f32 %v2137, %v2186
  %v2192 = vmul.f32 %v2138, %v2187
  %v2193 = vmul.f32 %v2139, %v2187
  %v2194 = vmul.f32 %v2140, %v2187
  %v2195 = vmul.f32 %v2141, %v2187
  %2196 = vst [vmem:[%s6] sm:$0xff] %v2188
  %2197 = vst [vmem:[%s6 + $0x8] sm:$0xff] %v2189
  %2198 = vst [vmem:[%s6 + $0x10] sm:$0xff] %v2190
  %2199 = vst [vmem:[%s6 + $0x18] sm:$0xff] %v2191
  %2200 = vst [vmem:[%s6 + $0x20] sm:$0xff] %v2192
  %2201 = vst [vmem:[%s6 + $0x28] sm:$0xff] %v2193
  %2202 = vst [vmem:[%s6 + $0x30] sm:$0xff] %v2194
  %2203 = vst [vmem:[%s6 + $0x38] sm:$0xff] %v2195
  // Predicated region
  $region26: #{deepten2_forward.1} parent=0 // pred_check
    _
  $region27: #{deepten2_forward.1} parent=0 // pred_check_branch
    %2205 = sbr.rel (0) target = $region29
  $region28: #{deepten2_forward.1} parent=0 // pred_region
    _
  $region29: #{deepten2_forward.1} parent=0 // pred_fallthru
    _
  // Predicated region
  $region30: #{deepten2_forward.1} parent=0 // pred_check
    _
  $region31: #{deepten2_forward.1} parent=0 // pred_check_branch
    %2207 = sbr.rel (0) target = $region33
  $region32: #{deepten2_forward.1} parent=0 // pred_region
    _
  $region33: #{deepten2_forward.1} parent=0 // pred_fallthru
    _

</llo_original>
